<compile_context>
chip_gen: v7x
topology: tpu7x:2x2x1
jax: 0.10.0
libtpu: 0.0.40
codegen_flags: <defaults>
</compile_context>

<pallas_src>
import functools

import jax
import jax.numpy as jnp
from jax import lax
from jax.experimental import pallas as pl
from jax.experimental.pallas import tpu as pltpu


def _bit_lstm_kernel(x_ref, w_ih_ref, w_hh_ref, b_ref, w_fc_ref, b_fc_ref,
                     out_ref, h_scr, c_scr, hs_scr):
    """One T-chunk of the LSTM recurrence + batched fc head.

    Refs (VMEM):
      x_ref   : (Bp, Tc)      lane-dense input chunk (batch on sublanes, time on lanes)
      w_ih_ref: (1, 4*Hp)     input->gates weights (gate blocks 128-aligned)
      w_hh_ref: (Hp, 4*Hp)    hidden->gates weights
      b_ref   : (1, 4*Hp)     b_ih + b_hh
      w_fc_ref: (8, Hp)       fc weights (row 0 real, rows 1..7 zero padding)
      b_fc_ref: (1, 1)        fc bias
      out_ref : (1, Tc*Bp)    lane-dense logits chunk (column t*Bp + b)
      h_scr   : (Bp, Hp)      hidden state (persists across chunk grid steps)
      c_scr   : (Bp, Hp)      cell state   (persists across chunk grid steps)
      hs_scr  : (Tc*Bp, Hp)   hidden-state sequence for the whole chunk
    """
    Bp, Hp = h_scr.shape
    Tc = x_ref.shape[1]

    # Zero the carried state on the first chunk only.
    @pl.when(pl.program_id(0) == 0)
    def _():
        h_scr[...] = jnp.zeros_like(h_scr)
        c_scr[...] = jnp.zeros_like(c_scr)

    # Loop-invariants hoisted out of the recurrence (JAX does not CSE broadcasts).
    x_all = x_ref[...]                                          # (Bp, Tc) lane-dense
    lane_ids = lax.broadcasted_iota(jnp.int32, (Bp, Tc), 1)     # lane index per column
    w_ih_b = jnp.broadcast_to(w_ih_ref[...], (Bp, 4 * Hp))
    b_b = jnp.broadcast_to(b_ref[...], (Bp, 4 * Hp))

    def step(t, carry):
        h, c = carry
        # x_t as a (Bp, 1) column: one-hot lane select + lane reduce (XLU slot,
        # avoids dynamic lane-dim slicing).
        xt = jnp.sum(jnp.where(lane_ids == t, x_all, 0.0), axis=1, keepdims=True)
        # gates = b + x_t * W_ih + h_{t-1} @ W_hh               -> (Bp, 4*Hp)
        gates = b_b + xt * w_ih_b + jnp.dot(
            h, w_hh_ref[...], preferred_element_type=jnp.float32)
        # PyTorch gate order i, f, g, o; each gate is a 128-lane-aligned block.
        i = jax.nn.sigmoid(gates[:, 0 * Hp:1 * Hp])
        f = jax.nn.sigmoid(gates[:, 1 * Hp:2 * Hp])
        g = jnp.tanh(gates[:, 2 * Hp:3 * Hp])
        o = jax.nn.sigmoid(gates[:, 3 * Hp:4 * Hp])
        c_new = f * c + i * g
        h_new = o * jnp.tanh(c_new)
        row = pl.multiple_of(t * Bp, Bp)                        # sublane-aligned offset
        hs_scr[pl.ds(row, Bp), :] = h_new                       # dense (Bp, Hp) store
        return h_new, c_new

    h_fin, c_fin = lax.fori_loop(0, Tc, step, (h_scr[...], c_scr[...]),
                                 unroll=min(8, Tc))
    h_scr[...] = h_fin
    c_scr[...] = c_fin

    # fc head: one NT matmul per chunk, lane-dense result; row 0 carries the fc.
    res = lax.dot_general(w_fc_ref[...], hs_scr[...],
                          dimension_numbers=(((1,), (1,)), ((), ())),
                          preferred_element_type=jnp.float32)   # (8, Tc*Bp)
    out_ref[...] = res[0:1, :] + b_fc_ref[...]


def _round_up(n, m):
    return ((n + m - 1) // m) * m


def _pad_gate_cols(w, H, Hp):
    """Re-layout (..., 4H) gate-major columns so gate k occupies [k*Hp, k*Hp+H)."""
    parts = []
    for k in range(4):
        gk = w[..., k * H:(k + 1) * H]
        pad_width = [(0, 0)] * (w.ndim - 1) + [(0, Hp - H)]
        parts.append(jnp.pad(gk, pad_width))
    return jnp.concatenate(parts, axis=-1)


@functools.partial(jax.jit, static_argnames=("t_chunk",))
def bit_lstm_forward(x, w_ih, w_hh, b, w_fc, b_fc, *, t_chunk=512):
    """x: (B, T, 1) float32 -> logits: (B, T, 1) float32."""
    B, T, _ = x.shape
    H = w_hh.shape[0]

    Hp = _round_up(H, 128)            # 128-lane alignment per gate
    Bp = _round_up(max(B, 8), 8)      # sublane alignment

    # VMEM-budgeted chunk length; multiple of 128 whenever T spans >1 chunk so the
    # lane-dense x / out blocks stay (8,128)-aligned.
    hs_budget = 8 * 1024 * 1024       # cap the resident h-sequence slab (~v7x-safe)
    cap = max(128, (hs_budget // (Bp * Hp * 4)) // 128 * 128)
    chunk_cap = min(cap, t_chunk)
    tc = T if T <= chunk_cap else chunk_cap
    Tp = _round_up(T, tc)
    n_chunks = Tp // tc

    # ---- pad / re-layout parameters (zero padding keeps padded lanes at h=c=0) --
    w_ih_p = _pad_gate_cols(w_ih, H, Hp)                      # (1, 4Hp)
    b_p = _pad_gate_cols(b, H, Hp)                            # (1, 4Hp)
    w_hh_p = _pad_gate_cols(w_hh, H, Hp)                      # (H, 4Hp)
    w_hh_p = jnp.pad(w_hh_p, ((0, Hp - H), (0, 0)))           # (Hp, 4Hp)
    w_fc_p = jnp.pad(w_fc, ((0, 7), (0, Hp - H)))             # (8, Hp), row 0 real
    b_fc_p = b_fc.astype(jnp.float32)                         # (1, 1)   <- was missing

    # ---- lane-dense input: (B,T,1) -> (Bp, Tp) ----------------------------------
    x_bt = jnp.pad(x[..., 0].astype(jnp.float32), ((0, Bp - B), (0, Tp - T)))

    # ---- explicit scoped-VMEM limit (blocks double-buffered + scratch, w/ margin)
    f32 = 4
    est = (2 * Bp * max(tc, 128) * f32
           + 2 * 8 * _round_up(tc * Bp, 128) * f32
           + 2 * (8 * 4 * Hp + Hp * 4 * Hp + 8 * 4 * Hp + 8 * Hp + 8 * 128) * f32
           + (2 * Bp * Hp + tc * Bp * Hp) * f32)
    vmem_limit = int(min(64 * 1024 * 1024, max(16 * 1024 * 1024, 2 * est)))

    out2d = pl.pallas_call(
        _bit_lstm_kernel,
        out_shape=jax.ShapeDtypeStruct((1, Tp * Bp), jnp.float32),
        grid_spec=pltpu.PrefetchScalarGridSpec(
            num_scalar_prefetch=0,
            grid=(n_chunks,),
            in_specs=[
                pl.BlockSpec((Bp, tc), lambda c: (0, c)),          # x chunk (lane-dense)
                pl.BlockSpec((1, 4 * Hp), lambda c: (0, 0)),       # w_ih
                pl.BlockSpec((Hp, 4 * Hp), lambda c: (0, 0)),      # w_hh
                pl.BlockSpec((1, 4 * Hp), lambda c: (0, 0)),       # b
                pl.BlockSpec((8, Hp), lambda c: (0, 0)),           # w_fc (row 0 real)
                pl.BlockSpec((1, 1), lambda c: (0, 0)),            # b_fc
            ],
            out_specs=pl.BlockSpec((1, tc * Bp), lambda c: (0, c)),
            scratch_shapes=[
                pltpu.VMEM((Bp, Hp), jnp.float32),                 # h (carried)
                pltpu.VMEM((Bp, Hp), jnp.float32),                 # c (carried)
                pltpu.VMEM((tc * Bp, Hp), jnp.float32),            # h-sequence slab
            ],
        ),
        compiler_params=pltpu.CompilerParams(
            # recurrence carried through scratch -> chunk axis must stay sequential
            dimension_semantics=("arbitrary",),
            vmem_limit_bytes=vmem_limit,
        ),
    )(x_bt, w_ih_p, w_hh_p, b_p, w_fc_p, b_fc_p)

    # out2d column layout: (c*tc + t) * Bp + b  ==  t_global * Bp + b
    out = out2d.reshape(Tp, Bp)[:T, :B]                        # (T, B)
    return jnp.transpose(out, (1, 0))[..., None]               # (B, T, 1)


def bit_lstm_reference(x, w_ih, w_hh, b, w_fc, b_fc):
    """Pure-JAX reference of the same forward pass (for validation)."""
    B, T, _ = x.shape
    H = w_hh.shape[0]
    h = jnp.zeros((B, H), jnp.float32)
    c = jnp.zeros((B, H), jnp.float32)
    outs = []
    for t in range(T):
        x_t = x[:, t, :]                                   # (B, 1)
        gates = x_t * w_ih + h @ w_hh + b                  # (B, 4H)
        i = jax.nn.sigmoid(gates[:, 0 * H:1 * H])
        f = jax.nn.sigmoid(gates[:, 1 * H:2 * H])
        g = jnp.tanh(gates[:, 2 * H:3 * H])
        o = jax.nn.sigmoid(gates[:, 3 * H:4 * H])
        c = f * c + i * g
        h = o * jnp.tanh(c)
        outs.append(h @ w_fc.T + b_fc)                     # (B, 1)
    return jnp.stack(outs, axis=1)                         # (B, T, 1)


def init_params(key, hidden_size):
    """Deterministic synthetic init matching PyTorch LSTM/Linear shapes."""
    H = hidden_size
    k = 1.0 / jnp.sqrt(jnp.float32(H))
    keys = jax.random.split(key, 6)
    # PyTorch-native shapes
    weight_ih = jax.random.uniform(keys[0], (4 * H, 1), jnp.float32, -k, k)
    weight_hh = jax.random.uniform(keys[1], (4 * H, H), jnp.float32, -k, k)
    bias_ih = jax.random.uniform(keys[2], (4 * H,), jnp.float32, -k, k)
    bias_hh = jax.random.uniform(keys[3], (4 * H,), jnp.float32, -k, k)
    fc_weight = jax.random.uniform(keys[4], (1, H), jnp.float32, -k, k)
    fc_bias = jax.random.uniform(keys[5], (1,), jnp.float32, -k, k)
    # Kernel-friendly layouts; padding/alignment is done in the wrapper.
    w_ih = weight_ih.T                          # (1, 4H)
    w_hh = weight_hh.T                          # (H, 4H)
    b = (bias_ih + bias_hh)[None, :]            # (1, 4H)
    w_fc = fc_weight                            # (1, H)
    b_fc = fc_bias[None, :]                     # (1, 1)
    return w_ih, w_hh, b, w_fc, b_fc


if __name__ == "__main__":
    B, T, H = 2, 8, 32

    root = jax.random.PRNGKey(0)
    k_x, k_p = jax.random.split(root)

    # bit sequence input: (B, T, 1) of {0.0, 1.0}
    x = jax.random.bernoulli(k_x, 0.5, (B, T, 1)).astype(jnp.float32)
    params = init_params(k_p, H)

    out = bit_lstm_forward(x, *params)
    out = jax.block_until_ready(out)
    assert out.shape == (B, T, 1), out.shape

    ref = bit_lstm_reference(x, *params)
    max_err = float(jnp.max(jnp.abs(out - ref)))
    assert max_err < 5e-4, f"mismatch vs reference: {max_err}"

    print("KERNEL_OK")
</pallas_src>

<mosaic_0001>
module attributes {stable_mosaic.version = 11 : i64} {
  func.func @_bit_lstm_kernel(%arg0: i32, %arg1: memref<8x8xf32, #tpu.memory_space<vmem>>, %arg2: memref<1x512xf32, #tpu.memory_space<vmem>>, %arg3: memref<128x512xf32, #tpu.memory_space<vmem>>, %arg4: memref<1x512xf32, #tpu.memory_space<vmem>>, %arg5: memref<8x128xf32, #tpu.memory_space<vmem>>, %arg6: memref<1x1xf32, #tpu.memory_space<vmem>>, %arg7: memref<1x64xf32, #tpu.memory_space<vmem>>, %arg8: memref<8x128xf32, #tpu.memory_space<vmem>>, %arg9: memref<8x128xf32, #tpu.memory_space<vmem>>, %arg10: memref<64x128xf32, #tpu.memory_space<vmem>>) attributes {dimension_semantics = [#tpu.dimension_semantics<arbitrary>], iteration_bounds = array<i64: 1>, scalar_prefetch = 0 : i64, scratch_operands = 3 : i64, tpu.core_type = #tpu.core_type<tc>, window_params = [{transform_indices = @transform_0, window_bounds = array<i64: 8, 8>}, {pipeline_mode = #tpu.pipeline_mode<synchronous>, transform_indices = @transform_1, window_bounds = array<i64: 1, 512>}, {pipeline_mode = #tpu.pipeline_mode<synchronous>, transform_indices = @transform_2, window_bounds = array<i64: 128, 512>}, {pipeline_mode = #tpu.pipeline_mode<synchronous>, transform_indices = @transform_3, window_bounds = array<i64: 1, 512>}, {pipeline_mode = #tpu.pipeline_mode<synchronous>, transform_indices = @transform_4, window_bounds = array<i64: 8, 128>}, {pipeline_mode = #tpu.pipeline_mode<synchronous>, transform_indices = @transform_5, window_bounds = array<i64: 1, 1>}, {transform_indices = @transform_6, window_bounds = array<i64: 1, 64>}]} {
    %c0_i32 = arith.constant 0 : i32
    %0 = arith.cmpi eq, %arg0, %c0_i32 : i32
    %1 = arith.extui %0 : i1 to i32
    %c0_i32_0 = arith.constant 0 : i32
    %2 = arith.cmpi ne, %1, %c0_i32_0 : i32
    scf.if %2 {
      %cst_103 = arith.constant 0.000000e+00 : f32
      %351 = vector.broadcast %cst_103 : f32 to vector<8x128xf32>
      %c0_104 = arith.constant 0 : index
      %c0_105 = arith.constant 0 : index
      %352 = vector.load %arg8[%c0_104, %c0_105] : memref<8x128xf32, #tpu.memory_space<vmem>>, vector<8x128xf32>
      tpu.vector_store %arg8[%c0_104, %c0_105], %351 {strides = array<i32>} : memref<8x128xf32, #tpu.memory_space<vmem>>, vector<8x128xf32>,
      %cst_106 = arith.constant 0.000000e+00 : f32
      %353 = vector.broadcast %cst_106 : f32 to vector<8x128xf32>
      %c0_107 = arith.constant 0 : index
      %c0_108 = arith.constant 0 : index
      %354 = vector.load %arg9[%c0_107, %c0_108] : memref<8x128xf32, #tpu.memory_space<vmem>>, vector<8x128xf32>
      tpu.vector_store %arg9[%c0_107, %c0_108], %353 {strides = array<i32>} : memref<8x128xf32, #tpu.memory_space<vmem>>, vector<8x128xf32>,
    } else {
    }
    %c0 = arith.constant 0 : index
    %c0_1 = arith.constant 0 : index
    %3 = vector.load %arg1[%c0, %c0_1] : memref<8x8xf32, #tpu.memory_space<vmem>>, vector<8x8xf32>
    %4 = tpu.iota {dimensions = array<i32: 1>} : vector<8x8xi32>
    %c0_2 = arith.constant 0 : index
    %c0_3 = arith.constant 0 : index
    %5 = vector.load %arg2[%c0_2, %c0_3] : memref<1x512xf32, #tpu.memory_space<vmem>>, vector<1x512xf32>
    %6 = vector.shape_cast %5 : vector<1x512xf32> to vector<1x512xf32>
    %7 = vector.broadcast %6 : vector<1x512xf32> to vector<8x512xf32>
    %c0_4 = arith.constant 0 : index
    %c0_5 = arith.constant 0 : index
    %8 = vector.load %arg4[%c0_4, %c0_5] : memref<1x512xf32, #tpu.memory_space<vmem>>, vector<1x512xf32>
    %9 = vector.shape_cast %8 : vector<1x512xf32> to vector<1x512xf32>
    %10 = vector.broadcast %9 : vector<1x512xf32> to vector<8x512xf32>
    %c0_6 = arith.constant 0 : index
    %c0_7 = arith.constant 0 : index
    %11 = vector.load %arg8[%c0_6, %c0_7] : memref<8x128xf32, #tpu.memory_space<vmem>>, vector<8x128xf32>
    %c0_8 = arith.constant 0 : index
    %c0_9 = arith.constant 0 : index
    %12 = vector.load %arg9[%c0_8, %c0_9] : memref<8x128xf32, #tpu.memory_space<vmem>>, vector<8x128xf32>
    %c0_i32_10 = arith.constant 0 : i32
    %13 = vector.broadcast %c0_i32_10 : i32 to vector<8x8xi32>
    %14 = arith.cmpi eq, %4, %13 : vector<8x8xi32>
    %cst = arith.constant 0.000000e+00 : f32
    %15 = vector.broadcast %cst : f32 to vector<8x8xf32>
    %16 = arith.select %14, %3, %15 : vector<8x8xi1>, vector<8x8xf32>
    %cst_11 = arith.constant dense<0.000000e+00> : vector<8xf32>
    %17 = vector.multi_reduction <add>, %16, %cst_11 [1] : vector<8x8xf32> to vector<8xf32>
    %18 = vector.shape_cast %17 : vector<8xf32> to vector<8x1xf32>
    %19 = vector.broadcast %18 : vector<8x1xf32> to vector<8x512xf32>
    %20 = arith.mulf %19, %7 : vector<8x512xf32>
    %21 = arith.addf %10, %20 : vector<8x512xf32>
    %c0_12 = arith.constant 0 : index
    %c0_13 = arith.constant 0 : index
    %22 = vector.load %arg3[%c0_12, %c0_13] : memref<128x512xf32, #tpu.memory_space<vmem>>, vector<128x512xf32>
    %cst_14 = arith.constant dense<0.000000e+00> : vector<8x512xf32>
    %23 = tpu.matmul %11, %22, %cst_14 {dimension_numbers = #tpu.dot_dimension_numbers<[1], [0], [0], [1], [0, 0, 1, 1], [], []>} : vector<8x128xf32>, vector<128x512xf32>, vector<8x512xf32> -> vector<8x512xf32>
    %24 = arith.addf %21, %23 : vector<8x512xf32>
    %25 = vector.extract_strided_slice %24 {offsets = [0, 0], sizes = [8, 128], strides = [1, 1]} : vector<8x512xf32> to vector<8x128xf32>
    %26 = arith.negf %25 : vector<8x128xf32>
    %27 = math.exp %26 : vector<8x128xf32>
    %cst_15 = arith.constant 1.000000e+00 : f32
    %28 = vector.broadcast %cst_15 : f32 to vector<8x128xf32>
    %29 = arith.addf %28, %27 : vector<8x128xf32>
    %30 = arith.divf %28, %29 : vector<8x128xf32>
    %31 = vector.extract_strided_slice %24 {offsets = [0, 128], sizes = [8, 128], strides = [1, 1]} : vector<8x512xf32> to vector<8x128xf32>
    %32 = arith.negf %31 : vector<8x128xf32>
    %33 = math.exp %32 : vector<8x128xf32>
    %cst_16 = arith.constant 1.000000e+00 : f32
    %34 = vector.broadcast %cst_16 : f32 to vector<8x128xf32>
    %35 = arith.addf %34, %33 : vector<8x128xf32>
    %36 = arith.divf %34, %35 : vector<8x128xf32>
    %37 = vector.extract_strided_slice %24 {offsets = [0, 256], sizes = [8, 128], strides = [1, 1]} : vector<8x512xf32> to vector<8x128xf32>
    %38 = math.tanh %37 : vector<8x128xf32>
    %39 = vector.extract_strided_slice %24 {offsets = [0, 384], sizes = [8, 128], strides = [1, 1]} : vector<8x512xf32> to vector<8x128xf32>
    %40 = arith.negf %39 : vector<8x128xf32>
    %41 = math.exp %40 : vector<8x128xf32>
    %cst_17 = arith.constant 1.000000e+00 : f32
    %42 = vector.broadcast %cst_17 : f32 to vector<8x128xf32>
    %43 = arith.addf %42, %41 : vector<8x128xf32>
    %44 = arith.divf %42, %43 : vector<8x128xf32>
    %45 = arith.mulf %36, %12 : vector<8x128xf32>
    %46 = arith.mulf %30, %38 : vector<8x128xf32>
    %47 = arith.addf %45, %46 : vector<8x128xf32>
    %48 = math.tanh %47 : vector<8x128xf32>
    %49 = arith.mulf %44, %48 : vector<8x128xf32>
    %c8_i32 = arith.constant 8 : i32
    %50 = arith.muli %c0_i32_10, %c8_i32 : i32
    %51 = tpu.assume_multiple %50, 8 : i32
    %52 = arith.index_cast %51 : i32 to index
    %c0_18 = arith.constant 0 : index
    %53 = vector.load %arg10[%52, %c0_18] : memref<64x128xf32, #tpu.memory_space<vmem>>, vector<8x128xf32>
    tpu.vector_store %arg10[%52, %c0_18], %49 {strides = array<i32>} : memref<64x128xf32, #tpu.memory_space<vmem>>, vector<8x128xf32>,
    %c1_i32 = arith.constant 1 : i32
    %54 = vector.broadcast %c1_i32 : i32 to vector<8x8xi32>
    %55 = arith.cmpi eq, %4, %54 : vector<8x8xi32>
    %cst_19 = arith.constant 0.000000e+00 : f32
    %56 = vector.broadcast %cst_19 : f32 to vector<8x8xf32>
    %57 = arith.select %55, %3, %56 : vector<8x8xi1>, vector<8x8xf32>
    %cst_20 = arith.constant dense<0.000000e+00> : vector<8xf32>
    %58 = vector.multi_reduction <add>, %57, %cst_20 [1] : vector<8x8xf32> to vector<8xf32>
    %59 = vector.shape_cast %58 : vector<8xf32> to vector<8x1xf32>
    %60 = vector.broadcast %59 : vector<8x1xf32> to vector<8x512xf32>
    %61 = arith.mulf %60, %7 : vector<8x512xf32>
    %62 = arith.addf %10, %61 : vector<8x512xf32>
    %c0_21 = arith.constant 0 : index
    %c0_22 = arith.constant 0 : index
    %63 = vector.load %arg3[%c0_21, %c0_22] : memref<128x512xf32, #tpu.memory_space<vmem>>, vector<128x512xf32>
    %cst_23 = arith.constant dense<0.000000e+00> : vector<8x512xf32>
    %64 = tpu.matmul %49, %63, %cst_23 {dimension_numbers = #tpu.dot_dimension_numbers<[1], [0], [0], [1], [0, 0, 1, 1], [], []>} : vector<8x128xf32>, vector<128x512xf32>, vector<8x512xf32> -> vector<8x512xf32>
    %65 = arith.addf %62, %64 : vector<8x512xf32>
    %66 = vector.extract_strided_slice %65 {offsets = [0, 0], sizes = [8, 128], strides = [1, 1]} : vector<8x512xf32> to vector<8x128xf32>
    %67 = arith.negf %66 : vector<8x128xf32>
    %68 = math.exp %67 : vector<8x128xf32>
    %cst_24 = arith.constant 1.000000e+00 : f32
    %69 = vector.broadcast %cst_24 : f32 to vector<8x128xf32>
    %70 = arith.addf %69, %68 : vector<8x128xf32>
    %71 = arith.divf %69, %70 : vector<8x128xf32>
    %72 = vector.extract_strided_slice %65 {offsets = [0, 128], sizes = [8, 128], strides = [1, 1]} : vector<8x512xf32> to vector<8x128xf32>
    %73 = arith.negf %72 : vector<8x128xf32>
    %74 = math.exp %73 : vector<8x128xf32>
    %cst_25 = arith.constant 1.000000e+00 : f32
    %75 = vector.broadcast %cst_25 : f32 to vector<8x128xf32>
    %76 = arith.addf %75, %74 : vector<8x128xf32>
    %77 = arith.divf %75, %76 : vector<8x128xf32>
    %78 = vector.extract_strided_slice %65 {offsets = [0, 256], sizes = [8, 128], strides = [1, 1]} : vector<8x512xf32> to vector<8x128xf32>
    %79 = math.tanh %78 : vector<8x128xf32>
    %80 = vector.extract_strided_slice %65 {offsets = [0, 384], sizes = [8, 128], strides = [1, 1]} : vector<8x512xf32> to vector<8x128xf32>
    %81 = arith.negf %80 : vector<8x128xf32>
    %82 = math.exp %81 : vector<8x128xf32>
    %cst_26 = arith.constant 1.000000e+00 : f32
    %83 = vector.broadcast %cst_26 : f32 to vector<8x128xf32>
    %84 = arith.addf %83, %82 : vector<8x128xf32>
    %85 = arith.divf %83, %84 : vector<8x128xf32>
    %86 = arith.mulf %77, %47 : vector<8x128xf32>
    %87 = arith.mulf %71, %79 : vector<8x128xf32>
    %88 = arith.addf %86, %87 : vector<8x128xf32>
    %89 = math.tanh %88 : vector<8x128xf32>
    %90 = arith.mulf %85, %89 : vector<8x128xf32>
    %c8_i32_27 = arith.constant 8 : i32
    %91 = arith.muli %c1_i32, %c8_i32_27 : i32
    %92 = tpu.assume_multiple %91, 8 : i32
    %93 = arith.index_cast %92 : i32 to index
    %c0_28 = arith.constant 0 : index
    %94 = vector.load %arg10[%93, %c0_28] : memref<64x128xf32, #tpu.memory_space<vmem>>, vector<8x128xf32>
    tpu.vector_store %arg10[%93, %c0_28], %90 {strides = array<i32>} : memref<64x128xf32, #tpu.memory_space<vmem>>, vector<8x128xf32>,
    %c2_i32 = arith.constant 2 : i32
    %95 = vector.broadcast %c2_i32 : i32 to vector<8x8xi32>
    %96 = arith.cmpi eq, %4, %95 : vector<8x8xi32>
    %cst_29 = arith.constant 0.000000e+00 : f32
    %97 = vector.broadcast %cst_29 : f32 to vector<8x8xf32>
    %98 = arith.select %96, %3, %97 : vector<8x8xi1>, vector<8x8xf32>
    %cst_30 = arith.constant dense<0.000000e+00> : vector<8xf32>
    %99 = vector.multi_reduction <add>, %98, %cst_30 [1] : vector<8x8xf32> to vector<8xf32>
    %100 = vector.shape_cast %99 : vector<8xf32> to vector<8x1xf32>
    %101 = vector.broadcast %100 : vector<8x1xf32> to vector<8x512xf32>
    %102 = arith.mulf %101, %7 : vector<8x512xf32>
    %103 = arith.addf %10, %102 : vector<8x512xf32>
    %c0_31 = arith.constant 0 : index
    %c0_32 = arith.constant 0 : index
    %104 = vector.load %arg3[%c0_31, %c0_32] : memref<128x512xf32, #tpu.memory_space<vmem>>, vector<128x512xf32>
    %cst_33 = arith.constant dense<0.000000e+00> : vector<8x512xf32>
    %105 = tpu.matmul %90, %104, %cst_33 {dimension_numbers = #tpu.dot_dimension_numbers<[1], [0], [0], [1], [0, 0, 1, 1], [], []>} : vector<8x128xf32>, vector<128x512xf32>, vector<8x512xf32> -> vector<8x512xf32>
    %106 = arith.addf %103, %105 : vector<8x512xf32>
    %107 = vector.extract_strided_slice %106 {offsets = [0, 0], sizes = [8, 128], strides = [1, 1]} : vector<8x512xf32> to vector<8x128xf32>
    %108 = arith.negf %107 : vector<8x128xf32>
    %109 = math.exp %108 : vector<8x128xf32>
    %cst_34 = arith.constant 1.000000e+00 : f32
    %110 = vector.broadcast %cst_34 : f32 to vector<8x128xf32>
    %111 = arith.addf %110, %109 : vector<8x128xf32>
    %112 = arith.divf %110, %111 : vector<8x128xf32>
    %113 = vector.extract_strided_slice %106 {offsets = [0, 128], sizes = [8, 128], strides = [1, 1]} : vector<8x512xf32> to vector<8x128xf32>
    %114 = arith.negf %113 : vector<8x128xf32>
    %115 = math.exp %114 : vector<8x128xf32>
    %cst_35 = arith.constant 1.000000e+00 : f32
    %116 = vector.broadcast %cst_35 : f32 to vector<8x128xf32>
    %117 = arith.addf %116, %115 : vector<8x128xf32>
    %118 = arith.divf %116, %117 : vector<8x128xf32>
    %119 = vector.extract_strided_slice %106 {offsets = [0, 256], sizes = [8, 128], strides = [1, 1]} : vector<8x512xf32> to vector<8x128xf32>
    %120 = math.tanh %119 : vector<8x128xf32>
    %121 = vector.extract_strided_slice %106 {offsets = [0, 384], sizes = [8, 128], strides = [1, 1]} : vector<8x512xf32> to vector<8x128xf32>
    %122 = arith.negf %121 : vector<8x128xf32>
    %123 = math.exp %122 : vector<8x128xf32>
    %cst_36 = arith.constant 1.000000e+00 : f32
    %124 = vector.broadcast %cst_36 : f32 to vector<8x128xf32>
    %125 = arith.addf %124, %123 : vector<8x128xf32>
    %126 = arith.divf %124, %125 : vector<8x128xf32>
    %127 = arith.mulf %118, %88 : vector<8x128xf32>
    %128 = arith.mulf %112, %120 : vector<8x128xf32>
    %129 = arith.addf %127, %128 : vector<8x128xf32>
    %130 = math.tanh %129 : vector<8x128xf32>
    %131 = arith.mulf %126, %130 : vector<8x128xf32>
    %c8_i32_37 = arith.constant 8 : i32
    %132 = arith.muli %c2_i32, %c8_i32_37 : i32
    %133 = tpu.assume_multiple %132, 8 : i32
    %134 = arith.index_cast %133 : i32 to index
    %c0_38 = arith.constant 0 : index
    %135 = vector.load %arg10[%134, %c0_38] : memref<64x128xf32, #tpu.memory_space<vmem>>, vector<8x128xf32>
    tpu.vector_store %arg10[%134, %c0_38], %131 {strides = array<i32>} : memref<64x128xf32, #tpu.memory_space<vmem>>, vector<8x128xf32>,
    %c3_i32 = arith.constant 3 : i32
    %136 = vector.broadcast %c3_i32 : i32 to vector<8x8xi32>
    %137 = arith.cmpi eq, %4, %136 : vector<8x8xi32>
    %cst_39 = arith.constant 0.000000e+00 : f32
    %138 = vector.broadcast %cst_39 : f32 to vector<8x8xf32>
    %139 = arith.select %137, %3, %138 : vector<8x8xi1>, vector<8x8xf32>
    %cst_40 = arith.constant dense<0.000000e+00> : vector<8xf32>
    %140 = vector.multi_reduction <add>, %139, %cst_40 [1] : vector<8x8xf32> to vector<8xf32>
    %141 = vector.shape_cast %140 : vector<8xf32> to vector<8x1xf32>
    %142 = vector.broadcast %141 : vector<8x1xf32> to vector<8x512xf32>
    %143 = arith.mulf %142, %7 : vector<8x512xf32>
    %144 = arith.addf %10, %143 : vector<8x512xf32>
    %c0_41 = arith.constant 0 : index
    %c0_42 = arith.constant 0 : index
    %145 = vector.load %arg3[%c0_41, %c0_42] : memref<128x512xf32, #tpu.memory_space<vmem>>, vector<128x512xf32>
    %cst_43 = arith.constant dense<0.000000e+00> : vector<8x512xf32>
    %146 = tpu.matmul %131, %145, %cst_43 {dimension_numbers = #tpu.dot_dimension_numbers<[1], [0], [0], [1], [0, 0, 1, 1], [], []>} : vector<8x128xf32>, vector<128x512xf32>, vector<8x512xf32> -> vector<8x512xf32>
    %147 = arith.addf %144, %146 : vector<8x512xf32>
    %148 = vector.extract_strided_slice %147 {offsets = [0, 0], sizes = [8, 128], strides = [1, 1]} : vector<8x512xf32> to vector<8x128xf32>
    %149 = arith.negf %148 : vector<8x128xf32>
    %150 = math.exp %149 : vector<8x128xf32>
    %cst_44 = arith.constant 1.000000e+00 : f32
    %151 = vector.broadcast %cst_44 : f32 to vector<8x128xf32>
    %152 = arith.addf %151, %150 : vector<8x128xf32>
    %153 = arith.divf %151, %152 : vector<8x128xf32>
    %154 = vector.extract_strided_slice %147 {offsets = [0, 128], sizes = [8, 128], strides = [1, 1]} : vector<8x512xf32> to vector<8x128xf32>
    %155 = arith.negf %154 : vector<8x128xf32>
    %156 = math.exp %155 : vector<8x128xf32>
    %cst_45 = arith.constant 1.000000e+00 : f32
    %157 = vector.broadcast %cst_45 : f32 to vector<8x128xf32>
    %158 = arith.addf %157, %156 : vector<8x128xf32>
    %159 = arith.divf %157, %158 : vector<8x128xf32>
    %160 = vector.extract_strided_slice %147 {offsets = [0, 256], sizes = [8, 128], strides = [1, 1]} : vector<8x512xf32> to vector<8x128xf32>
    %161 = math.tanh %160 : vector<8x128xf32>
    %162 = vector.extract_strided_slice %147 {offsets = [0, 384], sizes = [8, 128], strides = [1, 1]} : vector<8x512xf32> to vector<8x128xf32>
    %163 = arith.negf %162 : vector<8x128xf32>
    %164 = math.exp %163 : vector<8x128xf32>
    %cst_46 = arith.constant 1.000000e+00 : f32
    %165 = vector.broadcast %cst_46 : f32 to vector<8x128xf32>
    %166 = arith.addf %165, %164 : vector<8x128xf32>
    %167 = arith.divf %165, %166 : vector<8x128xf32>
    %168 = arith.mulf %159, %129 : vector<8x128xf32>
    %169 = arith.mulf %153, %161 : vector<8x128xf32>
    %170 = arith.addf %168, %169 : vector<8x128xf32>
    %171 = math.tanh %170 : vector<8x128xf32>
    %172 = arith.mulf %167, %171 : vector<8x128xf32>
    %c8_i32_47 = arith.constant 8 : i32
    %173 = arith.muli %c3_i32, %c8_i32_47 : i32
    %174 = tpu.assume_multiple %173, 8 : i32
    %175 = arith.index_cast %174 : i32 to index
    %c0_48 = arith.constant 0 : index
    %176 = vector.load %arg10[%175, %c0_48] : memref<64x128xf32, #tpu.memory_space<vmem>>, vector<8x128xf32>
    tpu.vector_store %arg10[%175, %c0_48], %172 {strides = array<i32>} : memref<64x128xf32, #tpu.memory_space<vmem>>, vector<8x128xf32>,
    %c4_i32 = arith.constant 4 : i32
    %177 = vector.broadcast %c4_i32 : i32 to vector<8x8xi32>
    %178 = arith.cmpi eq, %4, %177 : vector<8x8xi32>
    %cst_49 = arith.constant 0.000000e+00 : f32
    %179 = vector.broadcast %cst_49 : f32 to vector<8x8xf32>
    %180 = arith.select %178, %3, %179 : vector<8x8xi1>, vector<8x8xf32>
    %cst_50 = arith.constant dense<0.000000e+00> : vector<8xf32>
    %181 = vector.multi_reduction <add>, %180, %cst_50 [1] : vector<8x8xf32> to vector<8xf32>
    %182 = vector.shape_cast %181 : vector<8xf32> to vector<8x1xf32>
    %183 = vector.broadcast %182 : vector<8x1xf32> to vector<8x512xf32>
    %184 = arith.mulf %183, %7 : vector<8x512xf32>
    %185 = arith.addf %10, %184 : vector<8x512xf32>
    %c0_51 = arith.constant 0 : index
    %c0_52 = arith.constant 0 : index
    %186 = vector.load %arg3[%c0_51, %c0_52] : memref<128x512xf32, #tpu.memory_space<vmem>>, vector<128x512xf32>
    %cst_53 = arith.constant dense<0.000000e+00> : vector<8x512xf32>
    %187 = tpu.matmul %172, %186, %cst_53 {dimension_numbers = #tpu.dot_dimension_numbers<[1], [0], [0], [1], [0, 0, 1, 1], [], []>} : vector<8x128xf32>, vector<128x512xf32>, vector<8x512xf32> -> vector<8x512xf32>
    %188 = arith.addf %185, %187 : vector<8x512xf32>
    %189 = vector.extract_strided_slice %188 {offsets = [0, 0], sizes = [8, 128], strides = [1, 1]} : vector<8x512xf32> to vector<8x128xf32>
    %190 = arith.negf %189 : vector<8x128xf32>
    %191 = math.exp %190 : vector<8x128xf32>
    %cst_54 = arith.constant 1.000000e+00 : f32
    %192 = vector.broadcast %cst_54 : f32 to vector<8x128xf32>
    %193 = arith.addf %192, %191 : vector<8x128xf32>
    %194 = arith.divf %192, %193 : vector<8x128xf32>
    %195 = vector.extract_strided_slice %188 {offsets = [0, 128], sizes = [8, 128], strides = [1, 1]} : vector<8x512xf32> to vector<8x128xf32>
    %196 = arith.negf %195 : vector<8x128xf32>
    %197 = math.exp %196 : vector<8x128xf32>
    %cst_55 = arith.constant 1.000000e+00 : f32
    %198 = vector.broadcast %cst_55 : f32 to vector<8x128xf32>
    %199 = arith.addf %198, %197 : vector<8x128xf32>
    %200 = arith.divf %198, %199 : vector<8x128xf32>
    %201 = vector.extract_strided_slice %188 {offsets = [0, 256], sizes = [8, 128], strides = [1, 1]} : vector<8x512xf32> to vector<8x128xf32>
    %202 = math.tanh %201 : vector<8x128xf32>
    %203 = vector.extract_strided_slice %188 {offsets = [0, 384], sizes = [8, 128], strides = [1, 1]} : vector<8x512xf32> to vector<8x128xf32>
    %204 = arith.negf %203 : vector<8x128xf32>
    %205 = math.exp %204 : vector<8x128xf32>
    %cst_56 = arith.constant 1.000000e+00 : f32
    %206 = vector.broadcast %cst_56 : f32 to vector<8x128xf32>
    %207 = arith.addf %206, %205 : vector<8x128xf32>
    %208 = arith.divf %206, %207 : vector<8x128xf32>
    %209 = arith.mulf %200, %170 : vector<8x128xf32>
    %210 = arith.mulf %194, %202 : vector<8x128xf32>
    %211 = arith.addf %209, %210 : vector<8x128xf32>
    %212 = math.tanh %211 : vector<8x128xf32>
    %213 = arith.mulf %208, %212 : vector<8x128xf32>
    %c8_i32_57 = arith.constant 8 : i32
    %214 = arith.muli %c4_i32, %c8_i32_57 : i32
    %215 = tpu.assume_multiple %214, 8 : i32
    %216 = arith.index_cast %215 : i32 to index
    %c0_58 = arith.constant 0 : index
    %217 = vector.load %arg10[%216, %c0_58] : memref<64x128xf32, #tpu.memory_space<vmem>>, vector<8x128xf32>
    tpu.vector_store %arg10[%216, %c0_58], %213 {strides = array<i32>} : memref<64x128xf32, #tpu.memory_space<vmem>>, vector<8x128xf32>,
    %c5_i32 = arith.constant 5 : i32
    %218 = vector.broadcast %c5_i32 : i32 to vector<8x8xi32>
    %219 = arith.cmpi eq, %4, %218 : vector<8x8xi32>
    %cst_59 = arith.constant 0.000000e+00 : f32
    %220 = vector.broadcast %cst_59 : f32 to vector<8x8xf32>
    %221 = arith.select %219, %3, %220 : vector<8x8xi1>, vector<8x8xf32>
    %cst_60 = arith.constant dense<0.000000e+00> : vector<8xf32>
    %222 = vector.multi_reduction <add>, %221, %cst_60 [1] : vector<8x8xf32> to vector<8xf32>
    %223 = vector.shape_cast %222 : vector<8xf32> to vector<8x1xf32>
    %224 = vector.broadcast %223 : vector<8x1xf32> to vector<8x512xf32>
    %225 = arith.mulf %224, %7 : vector<8x512xf32>
    %226 = arith.addf %10, %225 : vector<8x512xf32>
    %c0_61 = arith.constant 0 : index
    %c0_62 = arith.constant 0 : index
    %227 = vector.load %arg3[%c0_61, %c0_62] : memref<128x512xf32, #tpu.memory_space<vmem>>, vector<128x512xf32>
    %cst_63 = arith.constant dense<0.000000e+00> : vector<8x512xf32>
    %228 = tpu.matmul %213, %227, %cst_63 {dimension_numbers = #tpu.dot_dimension_numbers<[1], [0], [0], [1], [0, 0, 1, 1], [], []>} : vector<8x128xf32>, vector<128x512xf32>, vector<8x512xf32> -> vector<8x512xf32>
    %229 = arith.addf %226, %228 : vector<8x512xf32>
    %230 = vector.extract_strided_slice %229 {offsets = [0, 0], sizes = [8, 128], strides = [1, 1]} : vector<8x512xf32> to vector<8x128xf32>
    %231 = arith.negf %230 : vector<8x128xf32>
    %232 = math.exp %231 : vector<8x128xf32>
    %cst_64 = arith.constant 1.000000e+00 : f32
    %233 = vector.broadcast %cst_64 : f32 to vector<8x128xf32>
    %234 = arith.addf %233, %232 : vector<8x128xf32>
    %235 = arith.divf %233, %234 : vector<8x128xf32>
    %236 = vector.extract_strided_slice %229 {offsets = [0, 128], sizes = [8, 128], strides = [1, 1]} : vector<8x512xf32> to vector<8x128xf32>
    %237 = arith.negf %236 : vector<8x128xf32>
    %238 = math.exp %237 : vector<8x128xf32>
    %cst_65 = arith.constant 1.000000e+00 : f32
    %239 = vector.broadcast %cst_65 : f32 to vector<8x128xf32>
    %240 = arith.addf %239, %238 : vector<8x128xf32>
    %241 = arith.divf %239, %240 : vector<8x128xf32>
    %242 = vector.extract_strided_slice %229 {offsets = [0, 256], sizes = [8, 128], strides = [1, 1]} : vector<8x512xf32> to vector<8x128xf32>
    %243 = math.tanh %242 : vector<8x128xf32>
    %244 = vector.extract_strided_slice %229 {offsets = [0, 384], sizes = [8, 128], strides = [1, 1]} : vector<8x512xf32> to vector<8x128xf32>
    %245 = arith.negf %244 : vector<8x128xf32>
    %246 = math.exp %245 : vector<8x128xf32>
    %cst_66 = arith.constant 1.000000e+00 : f32
    %247 = vector.broadcast %cst_66 : f32 to vector<8x128xf32>
    %248 = arith.addf %247, %246 : vector<8x128xf32>
    %249 = arith.divf %247, %248 : vector<8x128xf32>
    %250 = arith.mulf %241, %211 : vector<8x128xf32>
    %251 = arith.mulf %235, %243 : vector<8x128xf32>
    %252 = arith.addf %250, %251 : vector<8x128xf32>
    %253 = math.tanh %252 : vector<8x128xf32>
    %254 = arith.mulf %249, %253 : vector<8x128xf32>
    %c8_i32_67 = arith.constant 8 : i32
    %255 = arith.muli %c5_i32, %c8_i32_67 : i32
    %256 = tpu.assume_multiple %255, 8 : i32
    %257 = arith.index_cast %256 : i32 to index
    %c0_68 = arith.constant 0 : index
    %258 = vector.load %arg10[%257, %c0_68] : memref<64x128xf32, #tpu.memory_space<vmem>>, vector<8x128xf32>
    tpu.vector_store %arg10[%257, %c0_68], %254 {strides = array<i32>} : memref<64x128xf32, #tpu.memory_space<vmem>>, vector<8x128xf32>,
    %c6_i32 = arith.constant 6 : i32
    %259 = vector.broadcast %c6_i32 : i32 to vector<8x8xi32>
    %260 = arith.cmpi eq, %4, %259 : vector<8x8xi32>
    %cst_69 = arith.constant 0.000000e+00 : f32
    %261 = vector.broadcast %cst_69 : f32 to vector<8x8xf32>
    %262 = arith.select %260, %3, %261 : vector<8x8xi1>, vector<8x8xf32>
    %cst_70 = arith.constant dense<0.000000e+00> : vector<8xf32>
    %263 = vector.multi_reduction <add>, %262, %cst_70 [1] : vector<8x8xf32> to vector<8xf32>
    %264 = vector.shape_cast %263 : vector<8xf32> to vector<8x1xf32>
    %265 = vector.broadcast %264 : vector<8x1xf32> to vector<8x512xf32>
    %266 = arith.mulf %265, %7 : vector<8x512xf32>
    %267 = arith.addf %10, %266 : vector<8x512xf32>
    %c0_71 = arith.constant 0 : index
    %c0_72 = arith.constant 0 : index
    %268 = vector.load %arg3[%c0_71, %c0_72] : memref<128x512xf32, #tpu.memory_space<vmem>>, vector<128x512xf32>
    %cst_73 = arith.constant dense<0.000000e+00> : vector<8x512xf32>
    %269 = tpu.matmul %254, %268, %cst_73 {dimension_numbers = #tpu.dot_dimension_numbers<[1], [0], [0], [1], [0, 0, 1, 1], [], []>} : vector<8x128xf32>, vector<128x512xf32>, vector<8x512xf32> -> vector<8x512xf32>
    %270 = arith.addf %267, %269 : vector<8x512xf32>
    %271 = vector.extract_strided_slice %270 {offsets = [0, 0], sizes = [8, 128], strides = [1, 1]} : vector<8x512xf32> to vector<8x128xf32>
    %272 = arith.negf %271 : vector<8x128xf32>
    %273 = math.exp %272 : vector<8x128xf32>
    %cst_74 = arith.constant 1.000000e+00 : f32
    %274 = vector.broadcast %cst_74 : f32 to vector<8x128xf32>
    %275 = arith.addf %274, %273 : vector<8x128xf32>
    %276 = arith.divf %274, %275 : vector<8x128xf32>
    %277 = vector.extract_strided_slice %270 {offsets = [0, 128], sizes = [8, 128], strides = [1, 1]} : vector<8x512xf32> to vector<8x128xf32>
    %278 = arith.negf %277 : vector<8x128xf32>
    %279 = math.exp %278 : vector<8x128xf32>
    %cst_75 = arith.constant 1.000000e+00 : f32
    %280 = vector.broadcast %cst_75 : f32 to vector<8x128xf32>
    %281 = arith.addf %280, %279 : vector<8x128xf32>
    %282 = arith.divf %280, %281 : vector<8x128xf32>
    %283 = vector.extract_strided_slice %270 {offsets = [0, 256], sizes = [8, 128], strides = [1, 1]} : vector<8x512xf32> to vector<8x128xf32>
    %284 = math.tanh %283 : vector<8x128xf32>
    %285 = vector.extract_strided_slice %270 {offsets = [0, 384], sizes = [8, 128], strides = [1, 1]} : vector<8x512xf32> to vector<8x128xf32>
    %286 = arith.negf %285 : vector<8x128xf32>
    %287 = math.exp %286 : vector<8x128xf32>
    %cst_76 = arith.constant 1.000000e+00 : f32
    %288 = vector.broadcast %cst_76 : f32 to vector<8x128xf32>
    %289 = arith.addf %288, %287 : vector<8x128xf32>
    %290 = arith.divf %288, %289 : vector<8x128xf32>
    %291 = arith.mulf %282, %252 : vector<8x128xf32>
    %292 = arith.mulf %276, %284 : vector<8x128xf32>
    %293 = arith.addf %291, %292 : vector<8x128xf32>
    %294 = math.tanh %293 : vector<8x128xf32>
    %295 = arith.mulf %290, %294 : vector<8x128xf32>
    %c8_i32_77 = arith.constant 8 : i32
    %296 = arith.muli %c6_i32, %c8_i32_77 : i32
    %297 = tpu.assume_multiple %296, 8 : i32
    %298 = arith.index_cast %297 : i32 to index
    %c0_78 = arith.constant 0 : index
    %299 = vector.load %arg10[%298, %c0_78] : memref<64x128xf32, #tpu.memory_space<vmem>>, vector<8x128xf32>
    tpu.vector_store %arg10[%298, %c0_78], %295 {strides = array<i32>} : memref<64x128xf32, #tpu.memory_space<vmem>>, vector<8x128xf32>,
    %c7_i32 = arith.constant 7 : i32
    %300 = vector.broadcast %c7_i32 : i32 to vector<8x8xi32>
    %301 = arith.cmpi eq, %4, %300 : vector<8x8xi32>
    %cst_79 = arith.constant 0.000000e+00 : f32
    %302 = vector.broadcast %cst_79 : f32 to vector<8x8xf32>
    %303 = arith.select %301, %3, %302 : vector<8x8xi1>, vector<8x8xf32>
    %cst_80 = arith.constant dense<0.000000e+00> : vector<8xf32>
    %304 = vector.multi_reduction <add>, %303, %cst_80 [1] : vector<8x8xf32> to vector<8xf32>
    %305 = vector.shape_cast %304 : vector<8xf32> to vector<8x1xf32>
    %306 = vector.broadcast %305 : vector<8x1xf32> to vector<8x512xf32>
    %307 = arith.mulf %306, %7 : vector<8x512xf32>
    %308 = arith.addf %10, %307 : vector<8x512xf32>
    %c0_81 = arith.constant 0 : index
    %c0_82 = arith.constant 0 : index
    %309 = vector.load %arg3[%c0_81, %c0_82] : memref<128x512xf32, #tpu.memory_space<vmem>>, vector<128x512xf32>
    %cst_83 = arith.constant dense<0.000000e+00> : vector<8x512xf32>
    %310 = tpu.matmul %295, %309, %cst_83 {dimension_numbers = #tpu.dot_dimension_numbers<[1], [0], [0], [1], [0, 0, 1, 1], [], []>} : vector<8x128xf32>, vector<128x512xf32>, vector<8x512xf32> -> vector<8x512xf32>
    %311 = arith.addf %308, %310 : vector<8x512xf32>
    %312 = vector.extract_strided_slice %311 {offsets = [0, 0], sizes = [8, 128], strides = [1, 1]} : vector<8x512xf32> to vector<8x128xf32>
    %313 = arith.negf %312 : vector<8x128xf32>
    %314 = math.exp %313 : vector<8x128xf32>
    %cst_84 = arith.constant 1.000000e+00 : f32
    %315 = vector.broadcast %cst_84 : f32 to vector<8x128xf32>
    %316 = arith.addf %315, %314 : vector<8x128xf32>
    %317 = arith.divf %315, %316 : vector<8x128xf32>
    %318 = vector.extract_strided_slice %311 {offsets = [0, 128], sizes = [8, 128], strides = [1, 1]} : vector<8x512xf32> to vector<8x128xf32>
    %319 = arith.negf %318 : vector<8x128xf32>
    %320 = math.exp %319 : vector<8x128xf32>
    %cst_85 = arith.constant 1.000000e+00 : f32
    %321 = vector.broadcast %cst_85 : f32 to vector<8x128xf32>
    %322 = arith.addf %321, %320 : vector<8x128xf32>
    %323 = arith.divf %321, %322 : vector<8x128xf32>
    %324 = vector.extract_strided_slice %311 {offsets = [0, 256], sizes = [8, 128], strides = [1, 1]} : vector<8x512xf32> to vector<8x128xf32>
    %325 = math.tanh %324 : vector<8x128xf32>
    %326 = vector.extract_strided_slice %311 {offsets = [0, 384], sizes = [8, 128], strides = [1, 1]} : vector<8x512xf32> to vector<8x128xf32>
    %327 = arith.negf %326 : vector<8x128xf32>
    %328 = math.exp %327 : vector<8x128xf32>
    %cst_86 = arith.constant 1.000000e+00 : f32
    %329 = vector.broadcast %cst_86 : f32 to vector<8x128xf32>
    %330 = arith.addf %329, %328 : vector<8x128xf32>
    %331 = arith.divf %329, %330 : vector<8x128xf32>
    %332 = arith.mulf %323, %293 : vector<8x128xf32>
    %333 = arith.mulf %317, %325 : vector<8x128xf32>
    %334 = arith.addf %332, %333 : vector<8x128xf32>
    %335 = math.tanh %334 : vector<8x128xf32>
    %336 = arith.mulf %331, %335 : vector<8x128xf32>
    %c8_i32_87 = arith.constant 8 : i32
    %337 = arith.muli %c7_i32, %c8_i32_87 : i32
    %338 = tpu.assume_multiple %337, 8 : i32
    %339 = arith.index_cast %338 : i32 to index
    %c0_88 = arith.constant 0 : index
    %340 = vector.load %arg10[%339, %c0_88] : memref<64x128xf32, #tpu.memory_space<vmem>>, vector<8x128xf32>
    tpu.vector_store %arg10[%339, %c0_88], %336 {strides = array<i32>} : memref<64x128xf32, #tpu.memory_space<vmem>>, vector<8x128xf32>,
    %c8_i32_89 = arith.constant 8 : i32
    %c0_90 = arith.constant 0 : index
    %c0_91 = arith.constant 0 : index
    %341 = vector.load %arg8[%c0_90, %c0_91] : memref<8x128xf32, #tpu.memory_space<vmem>>, vector<8x128xf32>
    tpu.vector_store %arg8[%c0_90, %c0_91], %336 {strides = array<i32>} : memref<8x128xf32, #tpu.memory_space<vmem>>, vector<8x128xf32>,
    %c0_92 = arith.constant 0 : index
    %c0_93 = arith.constant 0 : index
    %342 = vector.load %arg9[%c0_92, %c0_93] : memref<8x128xf32, #tpu.memory_space<vmem>>, vector<8x128xf32>
    tpu.vector_store %arg9[%c0_92, %c0_93], %334 {strides = array<i32>} : memref<8x128xf32, #tpu.memory_space<vmem>>, vector<8x128xf32>,
    %c0_94 = arith.constant 0 : index
    %c0_95 = arith.constant 0 : index
    %343 = vector.load %arg5[%c0_94, %c0_95] : memref<8x128xf32, #tpu.memory_space<vmem>>, vector<8x128xf32>
    %c0_96 = arith.constant 0 : index
    %c0_97 = arith.constant 0 : index
    %344 = vector.load %arg10[%c0_96, %c0_97] : memref<64x128xf32, #tpu.memory_space<vmem>>, vector<64x128xf32>
    %cst_98 = arith.constant dense<0.000000e+00> : vector<8x64xf32>
    %345 = tpu.matmul %343, %344, %cst_98 {dimension_numbers = #tpu.dot_dimension_numbers<[1], [1], [0], [0], [0, 0, 1, 0], [], []>} : vector<8x128xf32>, vector<64x128xf32>, vector<8x64xf32> -> vector<8x64xf32>
    %346 = vector.extract_strided_slice %345 {offsets = [0, 0], sizes = [1, 64], strides = [1, 1]} : vector<8x64xf32> to vector<1x64xf32>
    %c0_99 = arith.constant 0 : index
    %c0_100 = arith.constant 0 : index
    %347 = vector.load %arg6[%c0_99, %c0_100] : memref<1x1xf32, #tpu.memory_space<vmem>>, vector<1x1xf32>
    %348 = vector.broadcast %347 : vector<1x1xf32> to vector<1x64xf32>
    %349 = arith.addf %346, %348 : vector<1x64xf32>
    %c0_101 = arith.constant 0 : index
    %c0_102 = arith.constant 0 : index
    %350 = vector.load %arg7[%c0_101, %c0_102] : memref<1x64xf32, #tpu.memory_space<vmem>>, vector<1x64xf32>
    tpu.vector_store %arg7[%c0_101, %c0_102], %349 {strides = array<i32>} : memref<1x64xf32, #tpu.memory_space<vmem>>, vector<1x64xf32>,
    return
  }
  func.func @transform_0(%arg0: i32) -> (i32, i32) {
    %c0_i32 = arith.constant 0 : i32
    %c0_i32_0 = arith.constant 0 : i32
    return %c0_i32, %arg0 : i32, i32
  }
  func.func @transform_1(%arg0: i32) -> (i32, i32) {
    %c0_i32 = arith.constant 0 : i32
    %c0_i32_0 = arith.constant 0 : i32
    %c0_i32_1 = arith.constant 0 : i32
    return %c0_i32, %c0_i32_0 : i32, i32
  }
  func.func @transform_2(%arg0: i32) -> (i32, i32) {
    %c0_i32 = arith.constant 0 : i32
    %c0_i32_0 = arith.constant 0 : i32
    %c0_i32_1 = arith.constant 0 : i32
    return %c0_i32, %c0_i32_0 : i32, i32
  }
  func.func @transform_3(%arg0: i32) -> (i32, i32) {
    %c0_i32 = arith.constant 0 : i32
    %c0_i32_0 = arith.constant 0 : i32
    %c0_i32_1 = arith.constant 0 : i32
    return %c0_i32, %c0_i32_0 : i32, i32
  }
  func.func @transform_4(%arg0: i32) -> (i32, i32) {
    %c0_i32 = arith.constant 0 : i32
    %c0_i32_0 = arith.constant 0 : i32
    %c0_i32_1 = arith.constant 0 : i32
    return %c0_i32, %c0_i32_0 : i32, i32
  }
  func.func @transform_5(%arg0: i32) -> (i32, i32) {
    %c0_i32 = arith.constant 0 : i32
    %c0_i32_0 = arith.constant 0 : i32
    %c0_i32_1 = arith.constant 0 : i32
    return %c0_i32, %c0_i32_0 : i32, i32
  }
  func.func @transform_6(%arg0: i32) -> (i32, i32) {
    %c0_i32 = arith.constant 0 : i32
    %c0_i32_0 = arith.constant 0 : i32
    return %c0_i32, %arg0 : i32, i32
  }
}

</mosaic_0001>

<llo_original>
// kernel: bit_lstm_forward.1
$region0: #{bit_lstm_forward.1}
  #allocation0 [shape = 'u32[]', space=smem, size = 0x4, offset = 0x4, fixed_abs, tag = 'smem constant byte address 0x4 - core index']
  #allocation1 [shape = 'u32[144,128]{1,0:T(1,128)}', space=vmem, size = 0x12000, scoped, tag = 'internal scratch']
  #allocation2 [shape = 'f32[8,128]{1,0:T(8,128)}', space=vmem, size = 0x1000, scoped, tag = 'scratch operand']
  #allocation3 [shape = 'f32[8,128]{1,0:T(8,128)}', space=vmem, size = 0x1000, scoped, tag = 'scratch operand']
  #allocation4 [shape = 'f32[64,128]{1,0:T(8,128)}', space=vmem, size = 0x8000, scoped, tag = 'scratch operand']
  #allocation5 [shape = 'f32[1,1]{1,0:T(1,128)S(1)}', space=vmem, size = 0x200, scoped, tag = 'scoped memory for bit_lstm_forward.1']
  %s0 = inlined_call_operand.vmem [shape: f32[8,8], index: 0, kind: input, shape index: {}]
  %s1 = inlined_call_operand.vmem [shape: f32[1,512], index: 1, kind: input, shape index: {}]
  %s2 = inlined_call_operand.vmem [shape: f32[128,512], index: 2, kind: input, shape index: {}]
  %s3 = inlined_call_operand.vmem [shape: f32[1,512], index: 3, kind: input, shape index: {}]
  %s4 = inlined_call_operand.vmem [shape: f32[8,128], index: 4, kind: input, shape index: {}]
  %s5 = inlined_call_operand.<no memory space> [shape: f32[1,1], index: 5, kind: input, shape index: {}]
  %s6 = inlined_call_operand.vmem [shape: f32[1,64], index: 6, kind: output, shape index: {}]
  %s7 = sld [smem:[#allocation0]]
  $region38: #{bit_lstm_forward.1} parent=0
    _
  %s9 = ssub.s32 1, %s7
  %s10 = scalar_select 0, %s9, %s7
  %v11 = vstv %s5
  %12 = vst [vmem:[#allocation5] sm:$0x1] %v11
  // Predicated region
  $region2: #{bit_lstm_forward.1} parent=0 // pred_check
    _
  $region3: #{bit_lstm_forward.1} parent=0 // pred_check_branch
    %14 = sbr.rel (0) target = $region5
  $region4: #{bit_lstm_forward.1} parent=0 // pred_region
    _
  $region5: #{bit_lstm_forward.1} parent=0 // pred_fallthru
    _
  // Predicated region
  $region6: #{bit_lstm_forward.1} parent=0 // pred_check
    _
  $region7: #{bit_lstm_forward.1} parent=0 // pred_check_branch
    %16 = sbr.rel (0) target = $region9
  $region8: #{bit_lstm_forward.1} parent=0 // pred_region
    _
  $region9: #{bit_lstm_forward.1} parent=0 // pred_fallthru
    _
  // Predicated region
  $region10: #{bit_lstm_forward.1} parent=0 // pred_check
    _
  $region11: #{bit_lstm_forward.1} parent=0 // pred_check_branch
    %18 = sbr.rel (0) target = $region13
  $region12: #{bit_lstm_forward.1} parent=0 // pred_region
    _
  $region13: #{bit_lstm_forward.1} parent=0 // pred_fallthru
    _
  // Predicated region
  $region14: #{bit_lstm_forward.1} parent=0 // pred_check
    _
  $region15: #{bit_lstm_forward.1} parent=0 // pred_check_branch
    %20 = sbr.rel (0) target = $region17
  $region16: #{bit_lstm_forward.1} parent=0 // pred_region
    _
  $region17: #{bit_lstm_forward.1} parent=0 // pred_fallthru
    _
  // Predicated region
  $region18: #{bit_lstm_forward.1} parent=0 // pred_check
    _
  $region19: #{bit_lstm_forward.1} parent=0 // pred_check_branch
    %22 = sbr.rel (0) target = $region21
  $region20: #{bit_lstm_forward.1} parent=0 // pred_region
    _
  $region21: #{bit_lstm_forward.1} parent=0 // pred_fallthru
    _
  // Predicated region
  $region22: #{bit_lstm_forward.1} parent=0 // pred_check
    _
  $region23: #{bit_lstm_forward.1} parent=0 // pred_check_branch
    %24 = sbr.rel (0) target = $region25
  $region24: #{bit_lstm_forward.1} parent=0 // pred_region
    _
  $region25: #{bit_lstm_forward.1} parent=0 // pred_fallthru
    _
  %p25 = scmp.eq.s32.totalorder 0, 0
  // Predicated region
  $region26: #{bit_lstm_forward.1} parent=0 // pred_check
    %p26 = pneg %p25
  $region27: #{bit_lstm_forward.1} parent=0 // pred_check_branch
    %28 = sbr.rel (%p26) target = $region29
  $region28: #{bit_lstm_forward.1} parent=0 // pred_region
    %29 = vst [vmem:[#allocation2] sm:$0xff] 0.0
    %30 = vst [vmem:[#allocation3] sm:$0xff] 0.0
  $region29: #{bit_lstm_forward.1} parent=0 // pred_fallthru
    _
  %v31 = vld [vmem:[%s0] sm:$0xff]
  %v32 = vlaneseq
  %v33 = vand.u32 %v32, 127
  %v34 = vld [vmem:[%s1] sm:$0xf]
  %v36 = vlaneseq
  %v37 = vshrl.u32 %v36, 7
  %v38 = vsub.s32 0, %v37
  %v39 = vrot.slane %v34, %v38
  %v40 = vlaneseq
  %v41 = vshrl.u32 %v40, 7
  %v42 = vsub.s32 1, %v41
  %v43 = vrot.slane %v34, %v42
  %v44 = vlaneseq
  %v45 = vshrl.u32 %v44, 7
  %v46 = vsub.s32 2, %v45
  %v47 = vrot.slane %v34, %v46
  %v48 = vlaneseq
  %v49 = vshrl.u32 %v48, 7
  %v50 = vsub.s32 3, %v49
  %v51 = vrot.slane %v34, %v50
  %v56 = vld [vmem:[%s3] sm:$0xf]
  %v58 = vlaneseq
  %v59 = vshrl.u32 %v58, 7
  %v60 = vsub.s32 0, %v59
  %v61 = vrot.slane %v56, %v60
  %v62 = vlaneseq
  %v63 = vshrl.u32 %v62, 7
  %v64 = vsub.s32 1, %v63
  %v65 = vrot.slane %v56, %v64
  %v66 = vlaneseq
  %v67 = vshrl.u32 %v66, 7
  %v68 = vsub.s32 2, %v67
  %v69 = vrot.slane %v56, %v68
  %v70 = vlaneseq
  %v71 = vshrl.u32 %v70, 7
  %v72 = vsub.s32 3, %v71
  %v73 = vrot.slane %v56, %v72
  %v78 = vld [vmem:[#allocation2] sm:$0xff]
  %v79 = vld [vmem:[#allocation3] sm:$0xff]
  %vm80 = vcmp.eq.s32.totalorder %v33, 0
  %v81 = vsel %vm80, %v31, 0.0
  %vm82 = vcmask 64512
  %v83 = vsel %vm82, %v81, 0.0
  %84 = vadd.xlane.f32.xlu0 %v83
  %v85 = vpop.xlane.xlu0 %84
  %v86 = vmul.f32 %v85, %v39
  %v87 = vmul.f32 %v85, %v43
  %v88 = vmul.f32 %v85, %v47
  %v89 = vmul.f32 %v85, %v51
  %v90 = vadd.f32 %v61, %v86
  %v91 = vadd.f32 %v65, %v87
  %v92 = vadd.f32 %v69, %v88
  %v93 = vadd.f32 %v73, %v89
  %v94 = vld [vmem:[%s2] sm:$0xff]
  %v95 = vld [vmem:[%s2 + $0x8] sm:$0xff]
  %v96 = vld [vmem:[%s2 + $0x10] sm:$0xff]
  %v97 = vld [vmem:[%s2 + $0x18] sm:$0xff]
  %v98 = vld [vmem:[%s2 + $0x20] sm:$0xff]
  %v99 = vld [vmem:[%s2 + $0x28] sm:$0xff]
  %v100 = vld [vmem:[%s2 + $0x30] sm:$0xff]
  %v101 = vld [vmem:[%s2 + $0x38] sm:$0xff]
  %v102 = vld [vmem:[%s2 + $0x40] sm:$0xff]
  %v103 = vld [vmem:[%s2 + $0x48] sm:$0xff]
  %v104 = vld [vmem:[%s2 + $0x50] sm:$0xff]
  %v105 = vld [vmem:[%s2 + $0x58] sm:$0xff]
  %v106 = vld [vmem:[%s2 + $0x60] sm:$0xff]
  %v107 = vld [vmem:[%s2 + $0x68] sm:$0xff]
  %v108 = vld [vmem:[%s2 + $0x70] sm:$0xff]
  %v109 = vld [vmem:[%s2 + $0x78] sm:$0xff]
  %v110 = vld [vmem:[%s2 + $0x80] sm:$0xff]
  %v111 = vld [vmem:[%s2 + $0x88] sm:$0xff]
  %v112 = vld [vmem:[%s2 + $0x90] sm:$0xff]
  %v113 = vld [vmem:[%s2 + $0x98] sm:$0xff]
  %v114 = vld [vmem:[%s2 + $0xa0] sm:$0xff]
  %v115 = vld [vmem:[%s2 + $0xa8] sm:$0xff]
  %v116 = vld [vmem:[%s2 + $0xb0] sm:$0xff]
  %v117 = vld [vmem:[%s2 + $0xb8] sm:$0xff]
  %v118 = vld [vmem:[%s2 + $0xc0] sm:$0xff]
  %v119 = vld [vmem:[%s2 + $0xc8] sm:$0xff]
  %v120 = vld [vmem:[%s2 + $0xd0] sm:$0xff]
  %v121 = vld [vmem:[%s2 + $0xd8] sm:$0xff]
  %v122 = vld [vmem:[%s2 + $0xe0] sm:$0xff]
  %v123 = vld [vmem:[%s2 + $0xe8] sm:$0xff]
  %v124 = vld [vmem:[%s2 + $0xf0] sm:$0xff]
  %v125 = vld [vmem:[%s2 + $0xf8] sm:$0xff]
  %v126 = vld [vmem:[%s2 + $0x100] sm:$0xff]
  %v127 = vld [vmem:[%s2 + $0x108] sm:$0xff]
  %v128 = vld [vmem:[%s2 + $0x110] sm:$0xff]
  %v129 = vld [vmem:[%s2 + $0x118] sm:$0xff]
  %v130 = vld [vmem:[%s2 + $0x120] sm:$0xff]
  %v131 = vld [vmem:[%s2 + $0x128] sm:$0xff]
  %v132 = vld [vmem:[%s2 + $0x130] sm:$0xff]
  %v133 = vld [vmem:[%s2 + $0x138] sm:$0xff]
  %v134 = vld [vmem:[%s2 + $0x140] sm:$0xff]
  %v135 = vld [vmem:[%s2 + $0x148] sm:$0xff]
  %v136 = vld [vmem:[%s2 + $0x150] sm:$0xff]
  %v137 = vld [vmem:[%s2 + $0x158] sm:$0xff]
  %v138 = vld [vmem:[%s2 + $0x160] sm:$0xff]
  %v139 = vld [vmem:[%s2 + $0x168] sm:$0xff]
  %v140 = vld [vmem:[%s2 + $0x170] sm:$0xff]
  %v141 = vld [vmem:[%s2 + $0x178] sm:$0xff]
  %v142 = vld [vmem:[%s2 + $0x180] sm:$0xff]
  %v143 = vld [vmem:[%s2 + $0x188] sm:$0xff]
  %v144 = vld [vmem:[%s2 + $0x190] sm:$0xff]
  %v145 = vld [vmem:[%s2 + $0x198] sm:$0xff]
  %v146 = vld [vmem:[%s2 + $0x1a0] sm:$0xff]
  %v147 = vld [vmem:[%s2 + $0x1a8] sm:$0xff]
  %v148 = vld [vmem:[%s2 + $0x1b0] sm:$0xff]
  %v149 = vld [vmem:[%s2 + $0x1b8] sm:$0xff]
  %v150 = vld [vmem:[%s2 + $0x1c0] sm:$0xff]
  %v151 = vld [vmem:[%s2 + $0x1c8] sm:$0xff]
  %v152 = vld [vmem:[%s2 + $0x1d0] sm:$0xff]
  %v153 = vld [vmem:[%s2 + $0x1d8] sm:$0xff]
  %v154 = vld [vmem:[%s2 + $0x1e0] sm:$0xff]
  %v155 = vld [vmem:[%s2 + $0x1e8] sm:$0xff]
  %v156 = vld [vmem:[%s2 + $0x1f0] sm:$0xff]
  %v157 = vld [vmem:[%s2 + $0x1f8] sm:$0xff]
  %158 = vmatprep.subr.mxu0 %v95
  %159 = vmatpush1.msra.mxu0 %v94
  %160 = vmatprep.subr.mxu0 %v99
  %161 = vmatpush1.msra.mxu0 %v98
  %162 = vmatprep.subr.mxu0 %v103
  %163 = vmatpush1.msra.mxu0 %v102
  %164 = vmatprep.subr.mxu0 %v107
  %165 = vmatpush1.msra.mxu0 %v106
  %166 = vmatprep.subr.mxu0 %v111
  %167 = vmatpush1.msra.mxu0 %v110
  %168 = vmatprep.subr.mxu0 %v115
  %169 = vmatpush1.msra.mxu0 %v114
  %170 = vmatprep.subr.mxu0 %v119
  %171 = vmatpush1.msra.mxu0 %v118
  %172 = vmatprep.subr.mxu0 %v123
  %173 = vmatpush1.msra.mxu0 %v122
  %174 = vmatprep.subr.mxu0 %v127
  %175 = vmatpush1.msra.mxu0 %v126
  %176 = vmatprep.subr.mxu0 %v131
  %177 = vmatpush1.msra.mxu0 %v130
  %178 = vmatprep.subr.mxu0 %v135
  %179 = vmatpush1.msra.mxu0 %v134
  %180 = vmatprep.subr.mxu0 %v139
  %181 = vmatpush1.msra.mxu0 %v138
  %182 = vmatprep.subr.mxu0 %v143
  %183 = vmatpush1.msra.mxu0 %v142
  %184 = vmatprep.subr.mxu0 %v147
  %185 = vmatpush1.msra.mxu0 %v146
  %186 = vmatprep.subr.mxu0 %v151
  %187 = vmatpush1.msra.mxu0 %v150
  %188 = vmatprep.subr.mxu0 %v155
  %189 = vmatpush1.msra.mxu0 %v154
  %190 = vmatprep.subr.mxu0 0.0
  %191 = vmatpush1.msra.mxu0 0.0
  %192 = vmatprep.subr.mxu0 0.0
  %193 = vmatpush1.msra.mxu0 0.0
  %194 = vmatprep.subr.mxu0 0.0
  %195 = vmatpush1.msra.mxu0 0.0
  %196 = vmatprep.subr.mxu0 0.0
  %197 = vmatpush1.msra.mxu0 0.0
  %198 = vmatprep.subr.mxu0 0.0
  %199 = vmatpush1.msra.mxu0 0.0
  %200 = vmatprep.subr.mxu0 0.0
  %201 = vmatpush1.msra.mxu0 0.0
  %202 = vmatprep.subr.mxu0 0.0
  %203 = vmatpush1.msra.mxu0 0.0
  %204 = vmatprep.subr.mxu0 0.0
  %205 = vmatpush1.msra.mxu0 0.0
  %206 = vmatprep.subr.mxu0 0.0
  %207 = vmatpush1.msra.mxu0 0.0
  %208 = vmatprep.subr.mxu0 0.0
  %209 = vmatpush1.msra.mxu0 0.0
  %210 = vmatprep.subr.mxu0 0.0
  %211 = vmatpush1.msra.mxu0 0.0
  %212 = vmatprep.subr.mxu0 0.0
  %213 = vmatpush1.msra.mxu0 0.0
  %214 = vmatprep.subr.mxu0 0.0
  %215 = vmatpush1.msra.mxu0 0.0
  %216 = vmatprep.subr.mxu0 0.0
  %217 = vmatpush1.msra.mxu0 0.0
  %218 = vmatprep.subr.mxu0 0.0
  %219 = vmatpush1.msra.mxu0 0.0
  %220 = vmatprep.subr.mxu0 0.0
  %221 = vmatpush1.msra.mxu0 0.0
  %222 = vmatprep.mubr.f32.mxu0 0.0
  %223 = vmatmul.mubr.f32.gmra.mrb[0].mxu0 %v78
  %v224 = vpop.f32.mrb[0].mxu0
  %v225 = vadd.f32 0.0, %v224
  %v226 = vpop.f32.mrb[0].mxu0
  %v227 = vadd.f32 0.0, %v226
  %228 = vdwg.mxu0
  %229 = vmatprep.subr.mxu0 %v97
  %230 = vmatpush1.msra.mxu0 %v96
  %231 = vmatprep.subr.mxu0 %v101
  %232 = vmatpush1.msra.mxu0 %v100
  %233 = vmatprep.subr.mxu0 %v105
  %234 = vmatpush1.msra.mxu0 %v104
  %235 = vmatprep.subr.mxu0 %v109
  %236 = vmatpush1.msra.mxu0 %v108
  %237 = vmatprep.subr.mxu0 %v113
  %238 = vmatpush1.msra.mxu0 %v112
  %239 = vmatprep.subr.mxu0 %v117
  %240 = vmatpush1.msra.mxu0 %v116
  %241 = vmatprep.subr.mxu0 %v121
  %242 = vmatpush1.msra.mxu0 %v120
  %243 = vmatprep.subr.mxu0 %v125
  %244 = vmatpush1.msra.mxu0 %v124
  %245 = vmatprep.subr.mxu0 %v129
  %246 = vmatpush1.msra.mxu0 %v128
  %247 = vmatprep.subr.mxu0 %v133
  %248 = vmatpush1.msra.mxu0 %v132
  %249 = vmatprep.subr.mxu0 %v137
  %250 = vmatpush1.msra.mxu0 %v136
  %251 = vmatprep.subr.mxu0 %v141
  %252 = vmatpush1.msra.mxu0 %v140
  %253 = vmatprep.subr.mxu0 %v145
  %254 = vmatpush1.msra.mxu0 %v144
  %255 = vmatprep.subr.mxu0 %v149
  %256 = vmatpush1.msra.mxu0 %v148
  %257 = vmatprep.subr.mxu0 %v153
  %258 = vmatpush1.msra.mxu0 %v152
  %259 = vmatprep.subr.mxu0 %v157
  %260 = vmatpush1.msra.mxu0 %v156
  %261 = vmatprep.subr.mxu0 0.0
  %262 = vmatpush1.msra.mxu0 0.0
  %263 = vmatprep.subr.mxu0 0.0
  %264 = vmatpush1.msra.mxu0 0.0
  %265 = vmatprep.subr.mxu0 0.0
  %266 = vmatpush1.msra.mxu0 0.0
  %267 = vmatprep.subr.mxu0 0.0
  %268 = vmatpush1.msra.mxu0 0.0
  %269 = vmatprep.subr.mxu0 0.0
  %270 = vmatpush1.msra.mxu0 0.0
  %271 = vmatprep.subr.mxu0 0.0
  %272 = vmatpush1.msra.mxu0 0.0
  %273 = vmatprep.subr.mxu0 0.0
  %274 = vmatpush1.msra.mxu0 0.0
  %275 = vmatprep.subr.mxu0 0.0
  %276 = vmatpush1.msra.mxu0 0.0
  %277 = vmatprep.subr.mxu0 0.0
  %278 = vmatpush1.msra.mxu0 0.0
  %279 = vmatprep.subr.mxu0 0.0
  %280 = vmatpush1.msra.mxu0 0.0
  %281 = vmatprep.subr.mxu0 0.0
  %282 = vmatpush1.msra.mxu0 0.0
  %283 = vmatprep.subr.mxu0 0.0
  %284 = vmatpush1.msra.mxu0 0.0
  %285 = vmatprep.subr.mxu0 0.0
  %286 = vmatpush1.msra.mxu0 0.0
  %287 = vmatprep.subr.mxu0 0.0
  %288 = vmatpush1.msra.mxu0 0.0
  %289 = vmatprep.subr.mxu0 0.0
  %290 = vmatpush1.msra.mxu0 0.0
  %291 = vmatprep.subr.mxu0 0.0
  %292 = vmatpush1.msra.mxu0 0.0
  %293 = vmatprep.mubr.f32.mxu0 0.0
  %294 = vmatmul.mubr.f32.gmra.mrb[0].mxu0 %v78
  %v295 = vpop.f32.mrb[0].mxu0
  %v296 = vadd.f32 0.0, %v295
  %v297 = vpop.f32.mrb[0].mxu0
  %v298 = vadd.f32 0.0, %v297
  %299 = vdwg.mxu0
  %v300 = vadd.f32 %v90, %v225
  %v301 = vadd.f32 %v91, %v227
  %v302 = vadd.f32 %v92, %v296
  %v303 = vadd.f32 %v93, %v298
  %v304 = vxor.u32 %v300, 2147483648
  %v305 = vmul.f32 %v304, 1.442695
  %v306 = vpow.pop %v305
  %v307 = vadd.f32 %v306, 1.0
  %v308 = vrcp.pop %v307
  %v309 = vmul.f32 1.0, %v308
  %v310 = vxor.u32 %v301, 2147483648
  %v311 = vmul.f32 %v310, 1.442695
  %v312 = vpow.pop %v311
  %v313 = vadd.f32 %v312, 1.0
  %v314 = vrcp.pop %v313
  %v315 = vmul.f32 1.0, %v314
  %v316 = vtanh.pop %v302
  %v317 = vxor.u32 %v303, 2147483648
  %v318 = vmul.f32 %v317, 1.442695
  %v319 = vpow.pop %v318
  %v320 = vadd.f32 %v319, 1.0
  %v321 = vrcp.pop %v320
  %v322 = vmul.f32 1.0, %v321
  %v323 = vmul.f32 %v315, %v79
  %v324 = vmul.f32 %v309, %v316
  %v325 = vadd.f32 %v323, %v324
  %v326 = vtanh.pop %v325
  %v327 = vmul.f32 %v322, %v326
  %328 = vst [vmem:[#allocation4] sm:$0xff] %v327
  %vm329 = vcmp.eq.s32.totalorder %v33, 1
  %v330 = vsel %vm329, %v31, 0.0
  %v331 = vsel %vm82, %v330, 0.0
  %332 = vadd.xlane.f32.xlu0 %v331
  %v333 = vpop.xlane.xlu0 %332
  %v334 = vmul.f32 %v333, %v39
  %v335 = vmul.f32 %v333, %v43
  %v336 = vmul.f32 %v333, %v47
  %v337 = vmul.f32 %v333, %v51
  %v338 = vadd.f32 %v61, %v334
  %v339 = vadd.f32 %v65, %v335
  %v340 = vadd.f32 %v69, %v336
  %v341 = vadd.f32 %v73, %v337
  %v342 = vld [vmem:[%s2] sm:$0xff]
  %v343 = vld [vmem:[%s2 + $0x8] sm:$0xff]
  %v344 = vld [vmem:[%s2 + $0x10] sm:$0xff]
  %v345 = vld [vmem:[%s2 + $0x18] sm:$0xff]
  %v346 = vld [vmem:[%s2 + $0x20] sm:$0xff]
  %v347 = vld [vmem:[%s2 + $0x28] sm:$0xff]
  %v348 = vld [vmem:[%s2 + $0x30] sm:$0xff]
  %v349 = vld [vmem:[%s2 + $0x38] sm:$0xff]
  %v350 = vld [vmem:[%s2 + $0x40] sm:$0xff]
  %v351 = vld [vmem:[%s2 + $0x48] sm:$0xff]
  %v352 = vld [vmem:[%s2 + $0x50] sm:$0xff]
  %v353 = vld [vmem:[%s2 + $0x58] sm:$0xff]
  %v354 = vld [vmem:[%s2 + $0x60] sm:$0xff]
  %v355 = vld [vmem:[%s2 + $0x68] sm:$0xff]
  %v356 = vld [vmem:[%s2 + $0x70] sm:$0xff]
  %v357 = vld [vmem:[%s2 + $0x78] sm:$0xff]
  %v358 = vld [vmem:[%s2 + $0x80] sm:$0xff]
  %v359 = vld [vmem:[%s2 + $0x88] sm:$0xff]
  %v360 = vld [vmem:[%s2 + $0x90] sm:$0xff]
  %v361 = vld [vmem:[%s2 + $0x98] sm:$0xff]
  %v362 = vld [vmem:[%s2 + $0xa0] sm:$0xff]
  %v363 = vld [vmem:[%s2 + $0xa8] sm:$0xff]
  %v364 = vld [vmem:[%s2 + $0xb0] sm:$0xff]
  %v365 = vld [vmem:[%s2 + $0xb8] sm:$0xff]
  %v366 = vld [vmem:[%s2 + $0xc0] sm:$0xff]
  %v367 = vld [vmem:[%s2 + $0xc8] sm:$0xff]
  %v368 = vld [vmem:[%s2 + $0xd0] sm:$0xff]
  %v369 = vld [vmem:[%s2 + $0xd8] sm:$0xff]
  %v370 = vld [vmem:[%s2 + $0xe0] sm:$0xff]
  %v371 = vld [vmem:[%s2 + $0xe8] sm:$0xff]
  %v372 = vld [vmem:[%s2 + $0xf0] sm:$0xff]
  %v373 = vld [vmem:[%s2 + $0xf8] sm:$0xff]
  %v374 = vld [vmem:[%s2 + $0x100] sm:$0xff]
  %v375 = vld [vmem:[%s2 + $0x108] sm:$0xff]
  %v376 = vld [vmem:[%s2 + $0x110] sm:$0xff]
  %v377 = vld [vmem:[%s2 + $0x118] sm:$0xff]
  %v378 = vld [vmem:[%s2 + $0x120] sm:$0xff]
  %v379 = vld [vmem:[%s2 + $0x128] sm:$0xff]
  %v380 = vld [vmem:[%s2 + $0x130] sm:$0xff]
  %v381 = vld [vmem:[%s2 + $0x138] sm:$0xff]
  %v382 = vld [vmem:[%s2 + $0x140] sm:$0xff]
  %v383 = vld [vmem:[%s2 + $0x148] sm:$0xff]
  %v384 = vld [vmem:[%s2 + $0x150] sm:$0xff]
  %v385 = vld [vmem:[%s2 + $0x158] sm:$0xff]
  %v386 = vld [vmem:[%s2 + $0x160] sm:$0xff]
  %v387 = vld [vmem:[%s2 + $0x168] sm:$0xff]
  %v388 = vld [vmem:[%s2 + $0x170] sm:$0xff]
  %v389 = vld [vmem:[%s2 + $0x178] sm:$0xff]
  %v390 = vld [vmem:[%s2 + $0x180] sm:$0xff]
  %v391 = vld [vmem:[%s2 + $0x188] sm:$0xff]
  %v392 = vld [vmem:[%s2 + $0x190] sm:$0xff]
  %v393 = vld [vmem:[%s2 + $0x198] sm:$0xff]
  %v394 = vld [vmem:[%s2 + $0x1a0] sm:$0xff]
  %v395 = vld [vmem:[%s2 + $0x1a8] sm:$0xff]
  %v396 = vld [vmem:[%s2 + $0x1b0] sm:$0xff]
  %v397 = vld [vmem:[%s2 + $0x1b8] sm:$0xff]
  %v398 = vld [vmem:[%s2 + $0x1c0] sm:$0xff]
  %v399 = vld [vmem:[%s2 + $0x1c8] sm:$0xff]
  %v400 = vld [vmem:[%s2 + $0x1d0] sm:$0xff]
  %v401 = vld [vmem:[%s2 + $0x1d8] sm:$0xff]
  %v402 = vld [vmem:[%s2 + $0x1e0] sm:$0xff]
  %v403 = vld [vmem:[%s2 + $0x1e8] sm:$0xff]
  %v404 = vld [vmem:[%s2 + $0x1f0] sm:$0xff]
  %v405 = vld [vmem:[%s2 + $0x1f8] sm:$0xff]
  %406 = vmatprep.subr.mxu0 %v343
  %407 = vmatpush1.msra.mxu0 %v342
  %408 = vmatprep.subr.mxu0 %v347
  %409 = vmatpush1.msra.mxu0 %v346
  %410 = vmatprep.subr.mxu0 %v351
  %411 = vmatpush1.msra.mxu0 %v350
  %412 = vmatprep.subr.mxu0 %v355
  %413 = vmatpush1.msra.mxu0 %v354
  %414 = vmatprep.subr.mxu0 %v359
  %415 = vmatpush1.msra.mxu0 %v358
  %416 = vmatprep.subr.mxu0 %v363
  %417 = vmatpush1.msra.mxu0 %v362
  %418 = vmatprep.subr.mxu0 %v367
  %419 = vmatpush1.msra.mxu0 %v366
  %420 = vmatprep.subr.mxu0 %v371
  %421 = vmatpush1.msra.mxu0 %v370
  %422 = vmatprep.subr.mxu0 %v375
  %423 = vmatpush1.msra.mxu0 %v374
  %424 = vmatprep.subr.mxu0 %v379
  %425 = vmatpush1.msra.mxu0 %v378
  %426 = vmatprep.subr.mxu0 %v383
  %427 = vmatpush1.msra.mxu0 %v382
  %428 = vmatprep.subr.mxu0 %v387
  %429 = vmatpush1.msra.mxu0 %v386
  %430 = vmatprep.subr.mxu0 %v391
  %431 = vmatpush1.msra.mxu0 %v390
  %432 = vmatprep.subr.mxu0 %v395
  %433 = vmatpush1.msra.mxu0 %v394
  %434 = vmatprep.subr.mxu0 %v399
  %435 = vmatpush1.msra.mxu0 %v398
  %436 = vmatprep.subr.mxu0 %v403
  %437 = vmatpush1.msra.mxu0 %v402
  %438 = vmatprep.subr.mxu0 0.0
  %439 = vmatpush1.msra.mxu0 0.0
  %440 = vmatprep.subr.mxu0 0.0
  %441 = vmatpush1.msra.mxu0 0.0
  %442 = vmatprep.subr.mxu0 0.0
  %443 = vmatpush1.msra.mxu0 0.0
  %444 = vmatprep.subr.mxu0 0.0
  %445 = vmatpush1.msra.mxu0 0.0
  %446 = vmatprep.subr.mxu0 0.0
  %447 = vmatpush1.msra.mxu0 0.0
  %448 = vmatprep.subr.mxu0 0.0
  %449 = vmatpush1.msra.mxu0 0.0
  %450 = vmatprep.subr.mxu0 0.0
  %451 = vmatpush1.msra.mxu0 0.0
  %452 = vmatprep.subr.mxu0 0.0
  %453 = vmatpush1.msra.mxu0 0.0
  %454 = vmatprep.subr.mxu0 0.0
  %455 = vmatpush1.msra.mxu0 0.0
  %456 = vmatprep.subr.mxu0 0.0
  %457 = vmatpush1.msra.mxu0 0.0
  %458 = vmatprep.subr.mxu0 0.0
  %459 = vmatpush1.msra.mxu0 0.0
  %460 = vmatprep.subr.mxu0 0.0
  %461 = vmatpush1.msra.mxu0 0.0
  %462 = vmatprep.subr.mxu0 0.0
  %463 = vmatpush1.msra.mxu0 0.0
  %464 = vmatprep.subr.mxu0 0.0
  %465 = vmatpush1.msra.mxu0 0.0
  %466 = vmatprep.subr.mxu0 0.0
  %467 = vmatpush1.msra.mxu0 0.0
  %468 = vmatprep.subr.mxu0 0.0
  %469 = vmatpush1.msra.mxu0 0.0
  %470 = vmatprep.mubr.f32.mxu0 0.0
  %471 = vmatmul.mubr.f32.gmra.mrb[0].mxu0 %v327
  %v472 = vpop.f32.mrb[0].mxu0
  %v473 = vadd.f32 0.0, %v472
  %v474 = vpop.f32.mrb[0].mxu0
  %v475 = vadd.f32 0.0, %v474
  %476 = vdwg.mxu0
  %477 = vmatprep.subr.mxu0 %v345
  %478 = vmatpush1.msra.mxu0 %v344
  %479 = vmatprep.subr.mxu0 %v349
  %480 = vmatpush1.msra.mxu0 %v348
  %481 = vmatprep.subr.mxu0 %v353
  %482 = vmatpush1.msra.mxu0 %v352
  %483 = vmatprep.subr.mxu0 %v357
  %484 = vmatpush1.msra.mxu0 %v356
  %485 = vmatprep.subr.mxu0 %v361
  %486 = vmatpush1.msra.mxu0 %v360
  %487 = vmatprep.subr.mxu0 %v365
  %488 = vmatpush1.msra.mxu0 %v364
  %489 = vmatprep.subr.mxu0 %v369
  %490 = vmatpush1.msra.mxu0 %v368
  %491 = vmatprep.subr.mxu0 %v373
  %492 = vmatpush1.msra.mxu0 %v372
  %493 = vmatprep.subr.mxu0 %v377
  %494 = vmatpush1.msra.mxu0 %v376
  %495 = vmatprep.subr.mxu0 %v381
  %496 = vmatpush1.msra.mxu0 %v380
  %497 = vmatprep.subr.mxu0 %v385
  %498 = vmatpush1.msra.mxu0 %v384
  %499 = vmatprep.subr.mxu0 %v389
  %500 = vmatpush1.msra.mxu0 %v388
  %501 = vmatprep.subr.mxu0 %v393
  %502 = vmatpush1.msra.mxu0 %v392
  %503 = vmatprep.subr.mxu0 %v397
  %504 = vmatpush1.msra.mxu0 %v396
  %505 = vmatprep.subr.mxu0 %v401
  %506 = vmatpush1.msra.mxu0 %v400
  %507 = vmatprep.subr.mxu0 %v405
  %508 = vmatpush1.msra.mxu0 %v404
  %509 = vmatprep.subr.mxu0 0.0
  %510 = vmatpush1.msra.mxu0 0.0
  %511 = vmatprep.subr.mxu0 0.0
  %512 = vmatpush1.msra.mxu0 0.0
  %513 = vmatprep.subr.mxu0 0.0
  %514 = vmatpush1.msra.mxu0 0.0
  %515 = vmatprep.subr.mxu0 0.0
  %516 = vmatpush1.msra.mxu0 0.0
  %517 = vmatprep.subr.mxu0 0.0
  %518 = vmatpush1.msra.mxu0 0.0
  %519 = vmatprep.subr.mxu0 0.0
  %520 = vmatpush1.msra.mxu0 0.0
  %521 = vmatprep.subr.mxu0 0.0
  %522 = vmatpush1.msra.mxu0 0.0
  %523 = vmatprep.subr.mxu0 0.0
  %524 = vmatpush1.msra.mxu0 0.0
  %525 = vmatprep.subr.mxu0 0.0
  %526 = vmatpush1.msra.mxu0 0.0
  %527 = vmatprep.subr.mxu0 0.0
  %528 = vmatpush1.msra.mxu0 0.0
  %529 = vmatprep.subr.mxu0 0.0
  %530 = vmatpush1.msra.mxu0 0.0
  %531 = vmatprep.subr.mxu0 0.0
  %532 = vmatpush1.msra.mxu0 0.0
  %533 = vmatprep.subr.mxu0 0.0
  %534 = vmatpush1.msra.mxu0 0.0
  %535 = vmatprep.subr.mxu0 0.0
  %536 = vmatpush1.msra.mxu0 0.0
  %537 = vmatprep.subr.mxu0 0.0
  %538 = vmatpush1.msra.mxu0 0.0
  %539 = vmatprep.subr.mxu0 0.0
  %540 = vmatpush1.msra.mxu0 0.0
  %541 = vmatprep.mubr.f32.mxu0 0.0
  %542 = vmatmul.mubr.f32.gmra.mrb[0].mxu0 %v327
  %v543 = vpop.f32.mrb[0].mxu0
  %v544 = vadd.f32 0.0, %v543
  %v545 = vpop.f32.mrb[0].mxu0
  %v546 = vadd.f32 0.0, %v545
  %547 = vdwg.mxu0
  %v548 = vadd.f32 %v338, %v473
  %v549 = vadd.f32 %v339, %v475
  %v550 = vadd.f32 %v340, %v544
  %v551 = vadd.f32 %v341, %v546
  %v552 = vxor.u32 %v548, 2147483648
  %v553 = vmul.f32 %v552, 1.442695
  %v554 = vpow.pop %v553
  %v555 = vadd.f32 %v554, 1.0
  %v556 = vrcp.pop %v555
  %v557 = vmul.f32 1.0, %v556
  %v558 = vxor.u32 %v549, 2147483648
  %v559 = vmul.f32 %v558, 1.442695
  %v560 = vpow.pop %v559
  %v561 = vadd.f32 %v560, 1.0
  %v562 = vrcp.pop %v561
  %v563 = vmul.f32 1.0, %v562
  %v564 = vtanh.pop %v550
  %v565 = vxor.u32 %v551, 2147483648
  %v566 = vmul.f32 %v565, 1.442695
  %v567 = vpow.pop %v566
  %v568 = vadd.f32 %v567, 1.0
  %v569 = vrcp.pop %v568
  %v570 = vmul.f32 1.0, %v569
  %v571 = vmul.f32 %v563, %v325
  %v572 = vmul.f32 %v557, %v564
  %v573 = vadd.f32 %v571, %v572
  %v574 = vtanh.pop %v573
  %v575 = vmul.f32 %v570, %v574
  %s576 = scalar_lea.vmem [#allocation4], 8
  %577 = vst [vmem:[%s576] sm:$0xff] %v575
  %vm578 = vcmp.eq.s32.totalorder %v33, 2
  %v579 = vsel %vm578, %v31, 0.0
  %v580 = vsel %vm82, %v579, 0.0
  %581 = vadd.xlane.f32.xlu0 %v580
  %v582 = vpop.xlane.xlu0 %581
  %v583 = vmul.f32 %v582, %v39
  %v584 = vmul.f32 %v582, %v43
  %v585 = vmul.f32 %v582, %v47
  %v586 = vmul.f32 %v582, %v51
  %v587 = vadd.f32 %v61, %v583
  %v588 = vadd.f32 %v65, %v584
  %v589 = vadd.f32 %v69, %v585
  %v590 = vadd.f32 %v73, %v586
  %v591 = vld [vmem:[%s2] sm:$0xff]
  %v592 = vld [vmem:[%s2 + $0x8] sm:$0xff]
  %v593 = vld [vmem:[%s2 + $0x10] sm:$0xff]
  %v594 = vld [vmem:[%s2 + $0x18] sm:$0xff]
  %v595 = vld [vmem:[%s2 + $0x20] sm:$0xff]
  %v596 = vld [vmem:[%s2 + $0x28] sm:$0xff]
  %v597 = vld [vmem:[%s2 + $0x30] sm:$0xff]
  %v598 = vld [vmem:[%s2 + $0x38] sm:$0xff]
  %v599 = vld [vmem:[%s2 + $0x40] sm:$0xff]
  %v600 = vld [vmem:[%s2 + $0x48] sm:$0xff]
  %v601 = vld [vmem:[%s2 + $0x50] sm:$0xff]
  %v602 = vld [vmem:[%s2 + $0x58] sm:$0xff]
  %v603 = vld [vmem:[%s2 + $0x60] sm:$0xff]
  %v604 = vld [vmem:[%s2 + $0x68] sm:$0xff]
  %v605 = vld [vmem:[%s2 + $0x70] sm:$0xff]
  %v606 = vld [vmem:[%s2 + $0x78] sm:$0xff]
  %v607 = vld [vmem:[%s2 + $0x80] sm:$0xff]
  %v608 = vld [vmem:[%s2 + $0x88] sm:$0xff]
  %v609 = vld [vmem:[%s2 + $0x90] sm:$0xff]
  %v610 = vld [vmem:[%s2 + $0x98] sm:$0xff]
  %v611 = vld [vmem:[%s2 + $0xa0] sm:$0xff]
  %v612 = vld [vmem:[%s2 + $0xa8] sm:$0xff]
  %v613 = vld [vmem:[%s2 + $0xb0] sm:$0xff]
  %v614 = vld [vmem:[%s2 + $0xb8] sm:$0xff]
  %v615 = vld [vmem:[%s2 + $0xc0] sm:$0xff]
  %v616 = vld [vmem:[%s2 + $0xc8] sm:$0xff]
  %v617 = vld [vmem:[%s2 + $0xd0] sm:$0xff]
  %v618 = vld [vmem:[%s2 + $0xd8] sm:$0xff]
  %v619 = vld [vmem:[%s2 + $0xe0] sm:$0xff]
  %v620 = vld [vmem:[%s2 + $0xe8] sm:$0xff]
  %v621 = vld [vmem:[%s2 + $0xf0] sm:$0xff]
  %v622 = vld [vmem:[%s2 + $0xf8] sm:$0xff]
  %v623 = vld [vmem:[%s2 + $0x100] sm:$0xff]
  %v624 = vld [vmem:[%s2 + $0x108] sm:$0xff]
  %v625 = vld [vmem:[%s2 + $0x110] sm:$0xff]
  %v626 = vld [vmem:[%s2 + $0x118] sm:$0xff]
  %v627 = vld [vmem:[%s2 + $0x120] sm:$0xff]
  %v628 = vld [vmem:[%s2 + $0x128] sm:$0xff]
  %v629 = vld [vmem:[%s2 + $0x130] sm:$0xff]
  %v630 = vld [vmem:[%s2 + $0x138] sm:$0xff]
  %v631 = vld [vmem:[%s2 + $0x140] sm:$0xff]
  %v632 = vld [vmem:[%s2 + $0x148] sm:$0xff]
  %v633 = vld [vmem:[%s2 + $0x150] sm:$0xff]
  %v634 = vld [vmem:[%s2 + $0x158] sm:$0xff]
  %v635 = vld [vmem:[%s2 + $0x160] sm:$0xff]
  %v636 = vld [vmem:[%s2 + $0x168] sm:$0xff]
  %v637 = vld [vmem:[%s2 + $0x170] sm:$0xff]
  %v638 = vld [vmem:[%s2 + $0x178] sm:$0xff]
  %v639 = vld [vmem:[%s2 + $0x180] sm:$0xff]
  %v640 = vld [vmem:[%s2 + $0x188] sm:$0xff]
  %v641 = vld [vmem:[%s2 + $0x190] sm:$0xff]
  %v642 = vld [vmem:[%s2 + $0x198] sm:$0xff]
  %v643 = vld [vmem:[%s2 + $0x1a0] sm:$0xff]
  %v644 = vld [vmem:[%s2 + $0x1a8] sm:$0xff]
  %v645 = vld [vmem:[%s2 + $0x1b0] sm:$0xff]
  %v646 = vld [vmem:[%s2 + $0x1b8] sm:$0xff]
  %v647 = vld [vmem:[%s2 + $0x1c0] sm:$0xff]
  %v648 = vld [vmem:[%s2 + $0x1c8] sm:$0xff]
  %v649 = vld [vmem:[%s2 + $0x1d0] sm:$0xff]
  %v650 = vld [vmem:[%s2 + $0x1d8] sm:$0xff]
  %v651 = vld [vmem:[%s2 + $0x1e0] sm:$0xff]
  %v652 = vld [vmem:[%s2 + $0x1e8] sm:$0xff]
  %v653 = vld [vmem:[%s2 + $0x1f0] sm:$0xff]
  %v654 = vld [vmem:[%s2 + $0x1f8] sm:$0xff]
  %655 = vmatprep.subr.mxu0 %v592
  %656 = vmatpush1.msra.mxu0 %v591
  %657 = vmatprep.subr.mxu0 %v596
  %658 = vmatpush1.msra.mxu0 %v595
  %659 = vmatprep.subr.mxu0 %v600
  %660 = vmatpush1.msra.mxu0 %v599
  %661 = vmatprep.subr.mxu0 %v604
  %662 = vmatpush1.msra.mxu0 %v603
  %663 = vmatprep.subr.mxu0 %v608
  %664 = vmatpush1.msra.mxu0 %v607
  %665 = vmatprep.subr.mxu0 %v612
  %666 = vmatpush1.msra.mxu0 %v611
  %667 = vmatprep.subr.mxu0 %v616
  %668 = vmatpush1.msra.mxu0 %v615
  %669 = vmatprep.subr.mxu0 %v620
  %670 = vmatpush1.msra.mxu0 %v619
  %671 = vmatprep.subr.mxu0 %v624
  %672 = vmatpush1.msra.mxu0 %v623
  %673 = vmatprep.subr.mxu0 %v628
  %674 = vmatpush1.msra.mxu0 %v627
  %675 = vmatprep.subr.mxu0 %v632
  %676 = vmatpush1.msra.mxu0 %v631
  %677 = vmatprep.subr.mxu0 %v636
  %678 = vmatpush1.msra.mxu0 %v635
  %679 = vmatprep.subr.mxu0 %v640
  %680 = vmatpush1.msra.mxu0 %v639
  %681 = vmatprep.subr.mxu0 %v644
  %682 = vmatpush1.msra.mxu0 %v643
  %683 = vmatprep.subr.mxu0 %v648
  %684 = vmatpush1.msra.mxu0 %v647
  %685 = vmatprep.subr.mxu0 %v652
  %686 = vmatpush1.msra.mxu0 %v651
  %687 = vmatprep.subr.mxu0 0.0
  %688 = vmatpush1.msra.mxu0 0.0
  %689 = vmatprep.subr.mxu0 0.0
  %690 = vmatpush1.msra.mxu0 0.0
  %691 = vmatprep.subr.mxu0 0.0
  %692 = vmatpush1.msra.mxu0 0.0
  %693 = vmatprep.subr.mxu0 0.0
  %694 = vmatpush1.msra.mxu0 0.0
  %695 = vmatprep.subr.mxu0 0.0
  %696 = vmatpush1.msra.mxu0 0.0
  %697 = vmatprep.subr.mxu0 0.0
  %698 = vmatpush1.msra.mxu0 0.0
  %699 = vmatprep.subr.mxu0 0.0
  %700 = vmatpush1.msra.mxu0 0.0
  %701 = vmatprep.subr.mxu0 0.0
  %702 = vmatpush1.msra.mxu0 0.0
  %703 = vmatprep.subr.mxu0 0.0
  %704 = vmatpush1.msra.mxu0 0.0
  %705 = vmatprep.subr.mxu0 0.0
  %706 = vmatpush1.msra.mxu0 0.0
  %707 = vmatprep.subr.mxu0 0.0
  %708 = vmatpush1.msra.mxu0 0.0
  %709 = vmatprep.subr.mxu0 0.0
  %710 = vmatpush1.msra.mxu0 0.0
  %711 = vmatprep.subr.mxu0 0.0
  %712 = vmatpush1.msra.mxu0 0.0
  %713 = vmatprep.subr.mxu0 0.0
  %714 = vmatpush1.msra.mxu0 0.0
  %715 = vmatprep.subr.mxu0 0.0
  %716 = vmatpush1.msra.mxu0 0.0
  %717 = vmatprep.subr.mxu0 0.0
  %718 = vmatpush1.msra.mxu0 0.0
  %719 = vmatprep.mubr.f32.mxu0 0.0
  %720 = vmatmul.mubr.f32.gmra.mrb[0].mxu0 %v575
  %v721 = vpop.f32.mrb[0].mxu0
  %v722 = vadd.f32 0.0, %v721
  %v723 = vpop.f32.mrb[0].mxu0
  %v724 = vadd.f32 0.0, %v723
  %725 = vdwg.mxu0
  %726 = vmatprep.subr.mxu0 %v594
  %727 = vmatpush1.msra.mxu0 %v593
  %728 = vmatprep.subr.mxu0 %v598
  %729 = vmatpush1.msra.mxu0 %v597
  %730 = vmatprep.subr.mxu0 %v602
  %731 = vmatpush1.msra.mxu0 %v601
  %732 = vmatprep.subr.mxu0 %v606
  %733 = vmatpush1.msra.mxu0 %v605
  %734 = vmatprep.subr.mxu0 %v610
  %735 = vmatpush1.msra.mxu0 %v609
  %736 = vmatprep.subr.mxu0 %v614
  %737 = vmatpush1.msra.mxu0 %v613
  %738 = vmatprep.subr.mxu0 %v618
  %739 = vmatpush1.msra.mxu0 %v617
  %740 = vmatprep.subr.mxu0 %v622
  %741 = vmatpush1.msra.mxu0 %v621
  %742 = vmatprep.subr.mxu0 %v626
  %743 = vmatpush1.msra.mxu0 %v625
  %744 = vmatprep.subr.mxu0 %v630
  %745 = vmatpush1.msra.mxu0 %v629
  %746 = vmatprep.subr.mxu0 %v634
  %747 = vmatpush1.msra.mxu0 %v633
  %748 = vmatprep.subr.mxu0 %v638
  %749 = vmatpush1.msra.mxu0 %v637
  %750 = vmatprep.subr.mxu0 %v642
  %751 = vmatpush1.msra.mxu0 %v641
  %752 = vmatprep.subr.mxu0 %v646
  %753 = vmatpush1.msra.mxu0 %v645
  %754 = vmatprep.subr.mxu0 %v650
  %755 = vmatpush1.msra.mxu0 %v649
  %756 = vmatprep.subr.mxu0 %v654
  %757 = vmatpush1.msra.mxu0 %v653
  %758 = vmatprep.subr.mxu0 0.0
  %759 = vmatpush1.msra.mxu0 0.0
  %760 = vmatprep.subr.mxu0 0.0
  %761 = vmatpush1.msra.mxu0 0.0
  %762 = vmatprep.subr.mxu0 0.0
  %763 = vmatpush1.msra.mxu0 0.0
  %764 = vmatprep.subr.mxu0 0.0
  %765 = vmatpush1.msra.mxu0 0.0
  %766 = vmatprep.subr.mxu0 0.0
  %767 = vmatpush1.msra.mxu0 0.0
  %768 = vmatprep.subr.mxu0 0.0
  %769 = vmatpush1.msra.mxu0 0.0
  %770 = vmatprep.subr.mxu0 0.0
  %771 = vmatpush1.msra.mxu0 0.0
  %772 = vmatprep.subr.mxu0 0.0
  %773 = vmatpush1.msra.mxu0 0.0
  %774 = vmatprep.subr.mxu0 0.0
  %775 = vmatpush1.msra.mxu0 0.0
  %776 = vmatprep.subr.mxu0 0.0
  %777 = vmatpush1.msra.mxu0 0.0
  %778 = vmatprep.subr.mxu0 0.0
  %779 = vmatpush1.msra.mxu0 0.0
  %780 = vmatprep.subr.mxu0 0.0
  %781 = vmatpush1.msra.mxu0 0.0
  %782 = vmatprep.subr.mxu0 0.0
  %783 = vmatpush1.msra.mxu0 0.0
  %784 = vmatprep.subr.mxu0 0.0
  %785 = vmatpush1.msra.mxu0 0.0
  %786 = vmatprep.subr.mxu0 0.0
  %787 = vmatpush1.msra.mxu0 0.0
  %788 = vmatprep.subr.mxu0 0.0
  %789 = vmatpush1.msra.mxu0 0.0
  %790 = vmatprep.mubr.f32.mxu0 0.0
  %791 = vmatmul.mubr.f32.gmra.mrb[0].mxu0 %v575
  %v792 = vpop.f32.mrb[0].mxu0
  %v793 = vadd.f32 0.0, %v792
  %v794 = vpop.f32.mrb[0].mxu0
  %v795 = vadd.f32 0.0, %v794
  %796 = vdwg.mxu0
  %v797 = vadd.f32 %v587, %v722
  %v798 = vadd.f32 %v588, %v724
  %v799 = vadd.f32 %v589, %v793
  %v800 = vadd.f32 %v590, %v795
  %v801 = vxor.u32 %v797, 2147483648
  %v802 = vmul.f32 %v801, 1.442695
  %v803 = vpow.pop %v802
  %v804 = vadd.f32 %v803, 1.0
  %v805 = vrcp.pop %v804
  %v806 = vmul.f32 1.0, %v805
  %v807 = vxor.u32 %v798, 2147483648
  %v808 = vmul.f32 %v807, 1.442695
  %v809 = vpow.pop %v808
  %v810 = vadd.f32 %v809, 1.0
  %v811 = vrcp.pop %v810
  %v812 = vmul.f32 1.0, %v811
  %v813 = vtanh.pop %v799
  %v814 = vxor.u32 %v800, 2147483648
  %v815 = vmul.f32 %v814, 1.442695
  %v816 = vpow.pop %v815
  %v817 = vadd.f32 %v816, 1.0
  %v818 = vrcp.pop %v817
  %v819 = vmul.f32 1.0, %v818
  %v820 = vmul.f32 %v812, %v573
  %v821 = vmul.f32 %v806, %v813
  %v822 = vadd.f32 %v820, %v821
  %v823 = vtanh.pop %v822
  %v824 = vmul.f32 %v819, %v823
  %s825 = scalar_lea.vmem [#allocation4], 16
  %826 = vst [vmem:[%s825] sm:$0xff] %v824
  %vm827 = vcmp.eq.s32.totalorder %v33, 3
  %v828 = vsel %vm827, %v31, 0.0
  %v829 = vsel %vm82, %v828, 0.0
  %830 = vadd.xlane.f32.xlu0 %v829
  %v831 = vpop.xlane.xlu0 %830
  %v832 = vmul.f32 %v831, %v39
  %v833 = vmul.f32 %v831, %v43
  %v834 = vmul.f32 %v831, %v47
  %v835 = vmul.f32 %v831, %v51
  %v836 = vadd.f32 %v61, %v832
  %v837 = vadd.f32 %v65, %v833
  %v838 = vadd.f32 %v69, %v834
  %v839 = vadd.f32 %v73, %v835
  %v840 = vld [vmem:[%s2] sm:$0xff]
  %v841 = vld [vmem:[%s2 + $0x8] sm:$0xff]
  %v842 = vld [vmem:[%s2 + $0x10] sm:$0xff]
  %v843 = vld [vmem:[%s2 + $0x18] sm:$0xff]
  %v844 = vld [vmem:[%s2 + $0x20] sm:$0xff]
  %v845 = vld [vmem:[%s2 + $0x28] sm:$0xff]
  %v846 = vld [vmem:[%s2 + $0x30] sm:$0xff]
  %v847 = vld [vmem:[%s2 + $0x38] sm:$0xff]
  %v848 = vld [vmem:[%s2 + $0x40] sm:$0xff]
  %v849 = vld [vmem:[%s2 + $0x48] sm:$0xff]
  %v850 = vld [vmem:[%s2 + $0x50] sm:$0xff]
  %v851 = vld [vmem:[%s2 + $0x58] sm:$0xff]
  %v852 = vld [vmem:[%s2 + $0x60] sm:$0xff]
  %v853 = vld [vmem:[%s2 + $0x68] sm:$0xff]
  %v854 = vld [vmem:[%s2 + $0x70] sm:$0xff]
  %v855 = vld [vmem:[%s2 + $0x78] sm:$0xff]
  %v856 = vld [vmem:[%s2 + $0x80] sm:$0xff]
  %v857 = vld [vmem:[%s2 + $0x88] sm:$0xff]
  %v858 = vld [vmem:[%s2 + $0x90] sm:$0xff]
  %v859 = vld [vmem:[%s2 + $0x98] sm:$0xff]
  %v860 = vld [vmem:[%s2 + $0xa0] sm:$0xff]
  %v861 = vld [vmem:[%s2 + $0xa8] sm:$0xff]
  %v862 = vld [vmem:[%s2 + $0xb0] sm:$0xff]
  %v863 = vld [vmem:[%s2 + $0xb8] sm:$0xff]
  %v864 = vld [vmem:[%s2 + $0xc0] sm:$0xff]
  %v865 = vld [vmem:[%s2 + $0xc8] sm:$0xff]
  %v866 = vld [vmem:[%s2 + $0xd0] sm:$0xff]
  %v867 = vld [vmem:[%s2 + $0xd8] sm:$0xff]
  %v868 = vld [vmem:[%s2 + $0xe0] sm:$0xff]
  %v869 = vld [vmem:[%s2 + $0xe8] sm:$0xff]
  %v870 = vld [vmem:[%s2 + $0xf0] sm:$0xff]
  %v871 = vld [vmem:[%s2 + $0xf8] sm:$0xff]
  %v872 = vld [vmem:[%s2 + $0x100] sm:$0xff]
  %v873 = vld [vmem:[%s2 + $0x108] sm:$0xff]
  %v874 = vld [vmem:[%s2 + $0x110] sm:$0xff]
  %v875 = vld [vmem:[%s2 + $0x118] sm:$0xff]
  %v876 = vld [vmem:[%s2 + $0x120] sm:$0xff]
  %v877 = vld [vmem:[%s2 + $0x128] sm:$0xff]
  %v878 = vld [vmem:[%s2 + $0x130] sm:$0xff]
  %v879 = vld [vmem:[%s2 + $0x138] sm:$0xff]
  %v880 = vld [vmem:[%s2 + $0x140] sm:$0xff]
  %v881 = vld [vmem:[%s2 + $0x148] sm:$0xff]
  %v882 = vld [vmem:[%s2 + $0x150] sm:$0xff]
  %v883 = vld [vmem:[%s2 + $0x158] sm:$0xff]
  %v884 = vld [vmem:[%s2 + $0x160] sm:$0xff]
  %v885 = vld [vmem:[%s2 + $0x168] sm:$0xff]
  %v886 = vld [vmem:[%s2 + $0x170] sm:$0xff]
  %v887 = vld [vmem:[%s2 + $0x178] sm:$0xff]
  %v888 = vld [vmem:[%s2 + $0x180] sm:$0xff]
  %v889 = vld [vmem:[%s2 + $0x188] sm:$0xff]
  %v890 = vld [vmem:[%s2 + $0x190] sm:$0xff]
  %v891 = vld [vmem:[%s2 + $0x198] sm:$0xff]
  %v892 = vld [vmem:[%s2 + $0x1a0] sm:$0xff]
  %v893 = vld [vmem:[%s2 + $0x1a8] sm:$0xff]
  %v894 = vld [vmem:[%s2 + $0x1b0] sm:$0xff]
  %v895 = vld [vmem:[%s2 + $0x1b8] sm:$0xff]
  %v896 = vld [vmem:[%s2 + $0x1c0] sm:$0xff]
  %v897 = vld [vmem:[%s2 + $0x1c8] sm:$0xff]
  %v898 = vld [vmem:[%s2 + $0x1d0] sm:$0xff]
  %v899 = vld [vmem:[%s2 + $0x1d8] sm:$0xff]
  %v900 = vld [vmem:[%s2 + $0x1e0] sm:$0xff]
  %v901 = vld [vmem:[%s2 + $0x1e8] sm:$0xff]
  %v902 = vld [vmem:[%s2 + $0x1f0] sm:$0xff]
  %v903 = vld [vmem:[%s2 + $0x1f8] sm:$0xff]
  %904 = vmatprep.subr.mxu0 %v841
  %905 = vmatpush1.msra.mxu0 %v840
  %906 = vmatprep.subr.mxu0 %v845
  %907 = vmatpush1.msra.mxu0 %v844
  %908 = vmatprep.subr.mxu0 %v849
  %909 = vmatpush1.msra.mxu0 %v848
  %910 = vmatprep.subr.mxu0 %v853
  %911 = vmatpush1.msra.mxu0 %v852
  %912 = vmatprep.subr.mxu0 %v857
  %913 = vmatpush1.msra.mxu0 %v856
  %914 = vmatprep.subr.mxu0 %v861
  %915 = vmatpush1.msra.mxu0 %v860
  %916 = vmatprep.subr.mxu0 %v865
  %917 = vmatpush1.msra.mxu0 %v864
  %918 = vmatprep.subr.mxu0 %v869
  %919 = vmatpush1.msra.mxu0 %v868
  %920 = vmatprep.subr.mxu0 %v873
  %921 = vmatpush1.msra.mxu0 %v872
  %922 = vmatprep.subr.mxu0 %v877
  %923 = vmatpush1.msra.mxu0 %v876
  %924 = vmatprep.subr.mxu0 %v881
  %925 = vmatpush1.msra.mxu0 %v880
  %926 = vmatprep.subr.mxu0 %v885
  %927 = vmatpush1.msra.mxu0 %v884
  %928 = vmatprep.subr.mxu0 %v889
  %929 = vmatpush1.msra.mxu0 %v888
  %930 = vmatprep.subr.mxu0 %v893
  %931 = vmatpush1.msra.mxu0 %v892
  %932 = vmatprep.subr.mxu0 %v897
  %933 = vmatpush1.msra.mxu0 %v896
  %934 = vmatprep.subr.mxu0 %v901
  %935 = vmatpush1.msra.mxu0 %v900
  %936 = vmatprep.subr.mxu0 0.0
  %937 = vmatpush1.msra.mxu0 0.0
  %938 = vmatprep.subr.mxu0 0.0
  %939 = vmatpush1.msra.mxu0 0.0
  %940 = vmatprep.subr.mxu0 0.0
  %941 = vmatpush1.msra.mxu0 0.0
  %942 = vmatprep.subr.mxu0 0.0
  %943 = vmatpush1.msra.mxu0 0.0
  %944 = vmatprep.subr.mxu0 0.0
  %945 = vmatpush1.msra.mxu0 0.0
  %946 = vmatprep.subr.mxu0 0.0
  %947 = vmatpush1.msra.mxu0 0.0
  %948 = vmatprep.subr.mxu0 0.0
  %949 = vmatpush1.msra.mxu0 0.0
  %950 = vmatprep.subr.mxu0 0.0
  %951 = vmatpush1.msra.mxu0 0.0
  %952 = vmatprep.subr.mxu0 0.0
  %953 = vmatpush1.msra.mxu0 0.0
  %954 = vmatprep.subr.mxu0 0.0
  %955 = vmatpush1.msra.mxu0 0.0
  %956 = vmatprep.subr.mxu0 0.0
  %957 = vmatpush1.msra.mxu0 0.0
  %958 = vmatprep.subr.mxu0 0.0
  %959 = vmatpush1.msra.mxu0 0.0
  %960 = vmatprep.subr.mxu0 0.0
  %961 = vmatpush1.msra.mxu0 0.0
  %962 = vmatprep.subr.mxu0 0.0
  %963 = vmatpush1.msra.mxu0 0.0
  %964 = vmatprep.subr.mxu0 0.0
  %965 = vmatpush1.msra.mxu0 0.0
  %966 = vmatprep.subr.mxu0 0.0
  %967 = vmatpush1.msra.mxu0 0.0
  %968 = vmatprep.mubr.f32.mxu0 0.0
  %969 = vmatmul.mubr.f32.gmra.mrb[0].mxu0 %v824
  %v970 = vpop.f32.mrb[0].mxu0
  %v971 = vadd.f32 0.0, %v970
  %v972 = vpop.f32.mrb[0].mxu0
  %v973 = vadd.f32 0.0, %v972
  %974 = vdwg.mxu0
  %975 = vmatprep.subr.mxu0 %v843
  %976 = vmatpush1.msra.mxu0 %v842
  %977 = vmatprep.subr.mxu0 %v847
  %978 = vmatpush1.msra.mxu0 %v846
  %979 = vmatprep.subr.mxu0 %v851
  %980 = vmatpush1.msra.mxu0 %v850
  %981 = vmatprep.subr.mxu0 %v855
  %982 = vmatpush1.msra.mxu0 %v854
  %983 = vmatprep.subr.mxu0 %v859
  %984 = vmatpush1.msra.mxu0 %v858
  %985 = vmatprep.subr.mxu0 %v863
  %986 = vmatpush1.msra.mxu0 %v862
  %987 = vmatprep.subr.mxu0 %v867
  %988 = vmatpush1.msra.mxu0 %v866
  %989 = vmatprep.subr.mxu0 %v871
  %990 = vmatpush1.msra.mxu0 %v870
  %991 = vmatprep.subr.mxu0 %v875
  %992 = vmatpush1.msra.mxu0 %v874
  %993 = vmatprep.subr.mxu0 %v879
  %994 = vmatpush1.msra.mxu0 %v878
  %995 = vmatprep.subr.mxu0 %v883
  %996 = vmatpush1.msra.mxu0 %v882
  %997 = vmatprep.subr.mxu0 %v887
  %998 = vmatpush1.msra.mxu0 %v886
  %999 = vmatprep.subr.mxu0 %v891
  %1000 = vmatpush1.msra.mxu0 %v890
  %1001 = vmatprep.subr.mxu0 %v895
  %1002 = vmatpush1.msra.mxu0 %v894
  %1003 = vmatprep.subr.mxu0 %v899
  %1004 = vmatpush1.msra.mxu0 %v898
  %1005 = vmatprep.subr.mxu0 %v903
  %1006 = vmatpush1.msra.mxu0 %v902
  %1007 = vmatprep.subr.mxu0 0.0
  %1008 = vmatpush1.msra.mxu0 0.0
  %1009 = vmatprep.subr.mxu0 0.0
  %1010 = vmatpush1.msra.mxu0 0.0
  %1011 = vmatprep.subr.mxu0 0.0
  %1012 = vmatpush1.msra.mxu0 0.0
  %1013 = vmatprep.subr.mxu0 0.0
  %1014 = vmatpush1.msra.mxu0 0.0
  %1015 = vmatprep.subr.mxu0 0.0
  %1016 = vmatpush1.msra.mxu0 0.0
  %1017 = vmatprep.subr.mxu0 0.0
  %1018 = vmatpush1.msra.mxu0 0.0
  %1019 = vmatprep.subr.mxu0 0.0
  %1020 = vmatpush1.msra.mxu0 0.0
  %1021 = vmatprep.subr.mxu0 0.0
  %1022 = vmatpush1.msra.mxu0 0.0
  %1023 = vmatprep.subr.mxu0 0.0
  %1024 = vmatpush1.msra.mxu0 0.0
  %1025 = vmatprep.subr.mxu0 0.0
  %1026 = vmatpush1.msra.mxu0 0.0
  %1027 = vmatprep.subr.mxu0 0.0
  %1028 = vmatpush1.msra.mxu0 0.0
  %1029 = vmatprep.subr.mxu0 0.0
  %1030 = vmatpush1.msra.mxu0 0.0
  %1031 = vmatprep.subr.mxu0 0.0
  %1032 = vmatpush1.msra.mxu0 0.0
  %1033 = vmatprep.subr.mxu0 0.0
  %1034 = vmatpush1.msra.mxu0 0.0
  %1035 = vmatprep.subr.mxu0 0.0
  %1036 = vmatpush1.msra.mxu0 0.0
  %1037 = vmatprep.subr.mxu0 0.0
  %1038 = vmatpush1.msra.mxu0 0.0
  %1039 = vmatprep.mubr.f32.mxu0 0.0
  %1040 = vmatmul.mubr.f32.gmra.mrb[0].mxu0 %v824
  %v1041 = vpop.f32.mrb[0].mxu0
  %v1042 = vadd.f32 0.0, %v1041
  %v1043 = vpop.f32.mrb[0].mxu0
  %v1044 = vadd.f32 0.0, %v1043
  %1045 = vdwg.mxu0
  %v1046 = vadd.f32 %v836, %v971
  %v1047 = vadd.f32 %v837, %v973
  %v1048 = vadd.f32 %v838, %v1042
  %v1049 = vadd.f32 %v839, %v1044
  %v1050 = vxor.u32 %v1046, 2147483648
  %v1051 = vmul.f32 %v1050, 1.442695
  %v1052 = vpow.pop %v1051
  %v1053 = vadd.f32 %v1052, 1.0
  %v1054 = vrcp.pop %v1053
  %v1055 = vmul.f32 1.0, %v1054
  %v1056 = vxor.u32 %v1047, 2147483648
  %v1057 = vmul.f32 %v1056, 1.442695
  %v1058 = vpow.pop %v1057
  %v1059 = vadd.f32 %v1058, 1.0
  %v1060 = vrcp.pop %v1059
  %v1061 = vmul.f32 1.0, %v1060
  %v1062 = vtanh.pop %v1048
  %v1063 = vxor.u32 %v1049, 2147483648
  %v1064 = vmul.f32 %v1063, 1.442695
  %v1065 = vpow.pop %v1064
  %v1066 = vadd.f32 %v1065, 1.0
  %v1067 = vrcp.pop %v1066
  %v1068 = vmul.f32 1.0, %v1067
  %v1069 = vmul.f32 %v1061, %v822
  %v1070 = vmul.f32 %v1055, %v1062
  %v1071 = vadd.f32 %v1069, %v1070
  %v1072 = vtanh.pop %v1071
  %v1073 = vmul.f32 %v1068, %v1072
  %s1074 = scalar_lea.vmem [#allocation4], 24
  %1075 = vst [vmem:[%s1074] sm:$0xff] %v1073
  %vm1076 = vcmp.eq.s32.totalorder %v33, 4
  %v1077 = vsel %vm1076, %v31, 0.0
  %v1078 = vsel %vm82, %v1077, 0.0
  %1079 = vadd.xlane.f32.xlu0 %v1078
  %v1080 = vpop.xlane.xlu0 %1079
  %v1081 = vmul.f32 %v1080, %v39
  %v1082 = vmul.f32 %v1080, %v43
  %v1083 = vmul.f32 %v1080, %v47
  %v1084 = vmul.f32 %v1080, %v51
  %v1085 = vadd.f32 %v61, %v1081
  %v1086 = vadd.f32 %v65, %v1082
  %v1087 = vadd.f32 %v69, %v1083
  %v1088 = vadd.f32 %v73, %v1084
  %v1089 = vld [vmem:[%s2] sm:$0xff]
  %v1090 = vld [vmem:[%s2 + $0x8] sm:$0xff]
  %v1091 = vld [vmem:[%s2 + $0x10] sm:$0xff]
  %v1092 = vld [vmem:[%s2 + $0x18] sm:$0xff]
  %v1093 = vld [vmem:[%s2 + $0x20] sm:$0xff]
  %v1094 = vld [vmem:[%s2 + $0x28] sm:$0xff]
  %v1095 = vld [vmem:[%s2 + $0x30] sm:$0xff]
  %v1096 = vld [vmem:[%s2 + $0x38] sm:$0xff]
  %v1097 = vld [vmem:[%s2 + $0x40] sm:$0xff]
  %v1098 = vld [vmem:[%s2 + $0x48] sm:$0xff]
  %v1099 = vld [vmem:[%s2 + $0x50] sm:$0xff]
  %v1100 = vld [vmem:[%s2 + $0x58] sm:$0xff]
  %v1101 = vld [vmem:[%s2 + $0x60] sm:$0xff]
  %v1102 = vld [vmem:[%s2 + $0x68] sm:$0xff]
  %v1103 = vld [vmem:[%s2 + $0x70] sm:$0xff]
  %v1104 = vld [vmem:[%s2 + $0x78] sm:$0xff]
  %v1105 = vld [vmem:[%s2 + $0x80] sm:$0xff]
  %v1106 = vld [vmem:[%s2 + $0x88] sm:$0xff]
  %v1107 = vld [vmem:[%s2 + $0x90] sm:$0xff]
  %v1108 = vld [vmem:[%s2 + $0x98] sm:$0xff]
  %v1109 = vld [vmem:[%s2 + $0xa0] sm:$0xff]
  %v1110 = vld [vmem:[%s2 + $0xa8] sm:$0xff]
  %v1111 = vld [vmem:[%s2 + $0xb0] sm:$0xff]
  %v1112 = vld [vmem:[%s2 + $0xb8] sm:$0xff]
  %v1113 = vld [vmem:[%s2 + $0xc0] sm:$0xff]
  %v1114 = vld [vmem:[%s2 + $0xc8] sm:$0xff]
  %v1115 = vld [vmem:[%s2 + $0xd0] sm:$0xff]
  %v1116 = vld [vmem:[%s2 + $0xd8] sm:$0xff]
  %v1117 = vld [vmem:[%s2 + $0xe0] sm:$0xff]
  %v1118 = vld [vmem:[%s2 + $0xe8] sm:$0xff]
  %v1119 = vld [vmem:[%s2 + $0xf0] sm:$0xff]
  %v1120 = vld [vmem:[%s2 + $0xf8] sm:$0xff]
  %v1121 = vld [vmem:[%s2 + $0x100] sm:$0xff]
  %v1122 = vld [vmem:[%s2 + $0x108] sm:$0xff]
  %v1123 = vld [vmem:[%s2 + $0x110] sm:$0xff]
  %v1124 = vld [vmem:[%s2 + $0x118] sm:$0xff]
  %v1125 = vld [vmem:[%s2 + $0x120] sm:$0xff]
  %v1126 = vld [vmem:[%s2 + $0x128] sm:$0xff]
  %v1127 = vld [vmem:[%s2 + $0x130] sm:$0xff]
  %v1128 = vld [vmem:[%s2 + $0x138] sm:$0xff]
  %v1129 = vld [vmem:[%s2 + $0x140] sm:$0xff]
  %v1130 = vld [vmem:[%s2 + $0x148] sm:$0xff]
  %v1131 = vld [vmem:[%s2 + $0x150] sm:$0xff]
  %v1132 = vld [vmem:[%s2 + $0x158] sm:$0xff]
  %v1133 = vld [vmem:[%s2 + $0x160] sm:$0xff]
  %v1134 = vld [vmem:[%s2 + $0x168] sm:$0xff]
  %v1135 = vld [vmem:[%s2 + $0x170] sm:$0xff]
  %v1136 = vld [vmem:[%s2 + $0x178] sm:$0xff]
  %v1137 = vld [vmem:[%s2 + $0x180] sm:$0xff]
  %v1138 = vld [vmem:[%s2 + $0x188] sm:$0xff]
  %v1139 = vld [vmem:[%s2 + $0x190] sm:$0xff]
  %v1140 = vld [vmem:[%s2 + $0x198] sm:$0xff]
  %v1141 = vld [vmem:[%s2 + $0x1a0] sm:$0xff]
  %v1142 = vld [vmem:[%s2 + $0x1a8] sm:$0xff]
  %v1143 = vld [vmem:[%s2 + $0x1b0] sm:$0xff]
  %v1144 = vld [vmem:[%s2 + $0x1b8] sm:$0xff]
  %v1145 = vld [vmem:[%s2 + $0x1c0] sm:$0xff]
  %v1146 = vld [vmem:[%s2 + $0x1c8] sm:$0xff]
  %v1147 = vld [vmem:[%s2 + $0x1d0] sm:$0xff]
  %v1148 = vld [vmem:[%s2 + $0x1d8] sm:$0xff]
  %v1149 = vld [vmem:[%s2 + $0x1e0] sm:$0xff]
  %v1150 = vld [vmem:[%s2 + $0x1e8] sm:$0xff]
  %v1151 = vld [vmem:[%s2 + $0x1f0] sm:$0xff]
  %v1152 = vld [vmem:[%s2 + $0x1f8] sm:$0xff]
  %1153 = vmatprep.subr.mxu0 %v1090
  %1154 = vmatpush1.msra.mxu0 %v1089
  %1155 = vmatprep.subr.mxu0 %v1094
  %1156 = vmatpush1.msra.mxu0 %v1093
  %1157 = vmatprep.subr.mxu0 %v1098
  %1158 = vmatpush1.msra.mxu0 %v1097
  %1159 = vmatprep.subr.mxu0 %v1102
  %1160 = vmatpush1.msra.mxu0 %v1101
  %1161 = vmatprep.subr.mxu0 %v1106
  %1162 = vmatpush1.msra.mxu0 %v1105
  %1163 = vmatprep.subr.mxu0 %v1110
  %1164 = vmatpush1.msra.mxu0 %v1109
  %1165 = vmatprep.subr.mxu0 %v1114
  %1166 = vmatpush1.msra.mxu0 %v1113
  %1167 = vmatprep.subr.mxu0 %v1118
  %1168 = vmatpush1.msra.mxu0 %v1117
  %1169 = vmatprep.subr.mxu0 %v1122
  %1170 = vmatpush1.msra.mxu0 %v1121
  %1171 = vmatprep.subr.mxu0 %v1126
  %1172 = vmatpush1.msra.mxu0 %v1125
  %1173 = vmatprep.subr.mxu0 %v1130
  %1174 = vmatpush1.msra.mxu0 %v1129
  %1175 = vmatprep.subr.mxu0 %v1134
  %1176 = vmatpush1.msra.mxu0 %v1133
  %1177 = vmatprep.subr.mxu0 %v1138
  %1178 = vmatpush1.msra.mxu0 %v1137
  %1179 = vmatprep.subr.mxu0 %v1142
  %1180 = vmatpush1.msra.mxu0 %v1141
  %1181 = vmatprep.subr.mxu0 %v1146
  %1182 = vmatpush1.msra.mxu0 %v1145
  %1183 = vmatprep.subr.mxu0 %v1150
  %1184 = vmatpush1.msra.mxu0 %v1149
  %1185 = vmatprep.subr.mxu0 0.0
  %1186 = vmatpush1.msra.mxu0 0.0
  %1187 = vmatprep.subr.mxu0 0.0
  %1188 = vmatpush1.msra.mxu0 0.0
  %1189 = vmatprep.subr.mxu0 0.0
  %1190 = vmatpush1.msra.mxu0 0.0
  %1191 = vmatprep.subr.mxu0 0.0
  %1192 = vmatpush1.msra.mxu0 0.0
  %1193 = vmatprep.subr.mxu0 0.0
  %1194 = vmatpush1.msra.mxu0 0.0
  %1195 = vmatprep.subr.mxu0 0.0
  %1196 = vmatpush1.msra.mxu0 0.0
  %1197 = vmatprep.subr.mxu0 0.0
  %1198 = vmatpush1.msra.mxu0 0.0
  %1199 = vmatprep.subr.mxu0 0.0
  %1200 = vmatpush1.msra.mxu0 0.0
  %1201 = vmatprep.subr.mxu0 0.0
  %1202 = vmatpush1.msra.mxu0 0.0
  %1203 = vmatprep.subr.mxu0 0.0
  %1204 = vmatpush1.msra.mxu0 0.0
  %1205 = vmatprep.subr.mxu0 0.0
  %1206 = vmatpush1.msra.mxu0 0.0
  %1207 = vmatprep.subr.mxu0 0.0
  %1208 = vmatpush1.msra.mxu0 0.0
  %1209 = vmatprep.subr.mxu0 0.0
  %1210 = vmatpush1.msra.mxu0 0.0
  %1211 = vmatprep.subr.mxu0 0.0
  %1212 = vmatpush1.msra.mxu0 0.0
  %1213 = vmatprep.subr.mxu0 0.0
  %1214 = vmatpush1.msra.mxu0 0.0
  %1215 = vmatprep.subr.mxu0 0.0
  %1216 = vmatpush1.msra.mxu0 0.0
  %1217 = vmatprep.mubr.f32.mxu0 0.0
  %1218 = vmatmul.mubr.f32.gmra.mrb[0].mxu0 %v1073
  %v1219 = vpop.f32.mrb[0].mxu0
  %v1220 = vadd.f32 0.0, %v1219
  %v1221 = vpop.f32.mrb[0].mxu0
  %v1222 = vadd.f32 0.0, %v1221
  %1223 = vdwg.mxu0
  %1224 = vmatprep.subr.mxu0 %v1092
  %1225 = vmatpush1.msra.mxu0 %v1091
  %1226 = vmatprep.subr.mxu0 %v1096
  %1227 = vmatpush1.msra.mxu0 %v1095
  %1228 = vmatprep.subr.mxu0 %v1100
  %1229 = vmatpush1.msra.mxu0 %v1099
  %1230 = vmatprep.subr.mxu0 %v1104
  %1231 = vmatpush1.msra.mxu0 %v1103
  %1232 = vmatprep.subr.mxu0 %v1108
  %1233 = vmatpush1.msra.mxu0 %v1107
  %1234 = vmatprep.subr.mxu0 %v1112
  %1235 = vmatpush1.msra.mxu0 %v1111
  %1236 = vmatprep.subr.mxu0 %v1116
  %1237 = vmatpush1.msra.mxu0 %v1115
  %1238 = vmatprep.subr.mxu0 %v1120
  %1239 = vmatpush1.msra.mxu0 %v1119
  %1240 = vmatprep.subr.mxu0 %v1124
  %1241 = vmatpush1.msra.mxu0 %v1123
  %1242 = vmatprep.subr.mxu0 %v1128
  %1243 = vmatpush1.msra.mxu0 %v1127
  %1244 = vmatprep.subr.mxu0 %v1132
  %1245 = vmatpush1.msra.mxu0 %v1131
  %1246 = vmatprep.subr.mxu0 %v1136
  %1247 = vmatpush1.msra.mxu0 %v1135
  %1248 = vmatprep.subr.mxu0 %v1140
  %1249 = vmatpush1.msra.mxu0 %v1139
  %1250 = vmatprep.subr.mxu0 %v1144
  %1251 = vmatpush1.msra.mxu0 %v1143
  %1252 = vmatprep.subr.mxu0 %v1148
  %1253 = vmatpush1.msra.mxu0 %v1147
  %1254 = vmatprep.subr.mxu0 %v1152
  %1255 = vmatpush1.msra.mxu0 %v1151
  %1256 = vmatprep.subr.mxu0 0.0
  %1257 = vmatpush1.msra.mxu0 0.0
  %1258 = vmatprep.subr.mxu0 0.0
  %1259 = vmatpush1.msra.mxu0 0.0
  %1260 = vmatprep.subr.mxu0 0.0
  %1261 = vmatpush1.msra.mxu0 0.0
  %1262 = vmatprep.subr.mxu0 0.0
  %1263 = vmatpush1.msra.mxu0 0.0
  %1264 = vmatprep.subr.mxu0 0.0
  %1265 = vmatpush1.msra.mxu0 0.0
  %1266 = vmatprep.subr.mxu0 0.0
  %1267 = vmatpush1.msra.mxu0 0.0
  %1268 = vmatprep.subr.mxu0 0.0
  %1269 = vmatpush1.msra.mxu0 0.0
  %1270 = vmatprep.subr.mxu0 0.0
  %1271 = vmatpush1.msra.mxu0 0.0
  %1272 = vmatprep.subr.mxu0 0.0
  %1273 = vmatpush1.msra.mxu0 0.0
  %1274 = vmatprep.subr.mxu0 0.0
  %1275 = vmatpush1.msra.mxu0 0.0
  %1276 = vmatprep.subr.mxu0 0.0
  %1277 = vmatpush1.msra.mxu0 0.0
  %1278 = vmatprep.subr.mxu0 0.0
  %1279 = vmatpush1.msra.mxu0 0.0
  %1280 = vmatprep.subr.mxu0 0.0
  %1281 = vmatpush1.msra.mxu0 0.0
  %1282 = vmatprep.subr.mxu0 0.0
  %1283 = vmatpush1.msra.mxu0 0.0
  %1284 = vmatprep.subr.mxu0 0.0
  %1285 = vmatpush1.msra.mxu0 0.0
  %1286 = vmatprep.subr.mxu0 0.0
  %1287 = vmatpush1.msra.mxu0 0.0
  %1288 = vmatprep.mubr.f32.mxu0 0.0
  %1289 = vmatmul.mubr.f32.gmra.mrb[0].mxu0 %v1073
  %v1290 = vpop.f32.mrb[0].mxu0
  %v1291 = vadd.f32 0.0, %v1290
  %v1292 = vpop.f32.mrb[0].mxu0
  %v1293 = vadd.f32 0.0, %v1292
  %1294 = vdwg.mxu0
  %v1295 = vadd.f32 %v1085, %v1220
  %v1296 = vadd.f32 %v1086, %v1222
  %v1297 = vadd.f32 %v1087, %v1291
  %v1298 = vadd.f32 %v1088, %v1293
  %v1299 = vxor.u32 %v1295, 2147483648
  %v1300 = vmul.f32 %v1299, 1.442695
  %v1301 = vpow.pop %v1300
  %v1302 = vadd.f32 %v1301, 1.0
  %v1303 = vrcp.pop %v1302
  %v1304 = vmul.f32 1.0, %v1303
  %v1305 = vxor.u32 %v1296, 2147483648
  %v1306 = vmul.f32 %v1305, 1.442695
  %v1307 = vpow.pop %v1306
  %v1308 = vadd.f32 %v1307, 1.0
  %v1309 = vrcp.pop %v1308
  %v1310 = vmul.f32 1.0, %v1309
  %v1311 = vtanh.pop %v1297
  %v1312 = vxor.u32 %v1298, 2147483648
  %v1313 = vmul.f32 %v1312, 1.442695
  %v1314 = vpow.pop %v1313
  %v1315 = vadd.f32 %v1314, 1.0
  %v1316 = vrcp.pop %v1315
  %v1317 = vmul.f32 1.0, %v1316
  %v1318 = vmul.f32 %v1310, %v1071
  %v1319 = vmul.f32 %v1304, %v1311
  %v1320 = vadd.f32 %v1318, %v1319
  %v1321 = vtanh.pop %v1320
  %v1322 = vmul.f32 %v1317, %v1321
  %s1323 = scalar_lea.vmem [#allocation4], 32
  %1324 = vst [vmem:[%s1323] sm:$0xff] %v1322
  %vm1325 = vcmp.eq.s32.totalorder %v33, 5
  %v1326 = vsel %vm1325, %v31, 0.0
  %v1327 = vsel %vm82, %v1326, 0.0
  %1328 = vadd.xlane.f32.xlu0 %v1327
  %v1329 = vpop.xlane.xlu0 %1328
  %v1330 = vmul.f32 %v1329, %v39
  %v1331 = vmul.f32 %v1329, %v43
  %v1332 = vmul.f32 %v1329, %v47
  %v1333 = vmul.f32 %v1329, %v51
  %v1334 = vadd.f32 %v61, %v1330
  %v1335 = vadd.f32 %v65, %v1331
  %v1336 = vadd.f32 %v69, %v1332
  %v1337 = vadd.f32 %v73, %v1333
  %v1338 = vld [vmem:[%s2] sm:$0xff]
  %v1339 = vld [vmem:[%s2 + $0x8] sm:$0xff]
  %v1340 = vld [vmem:[%s2 + $0x10] sm:$0xff]
  %v1341 = vld [vmem:[%s2 + $0x18] sm:$0xff]
  %v1342 = vld [vmem:[%s2 + $0x20] sm:$0xff]
  %v1343 = vld [vmem:[%s2 + $0x28] sm:$0xff]
  %v1344 = vld [vmem:[%s2 + $0x30] sm:$0xff]
  %v1345 = vld [vmem:[%s2 + $0x38] sm:$0xff]
  %v1346 = vld [vmem:[%s2 + $0x40] sm:$0xff]
  %v1347 = vld [vmem:[%s2 + $0x48] sm:$0xff]
  %v1348 = vld [vmem:[%s2 + $0x50] sm:$0xff]
  %v1349 = vld [vmem:[%s2 + $0x58] sm:$0xff]
  %v1350 = vld [vmem:[%s2 + $0x60] sm:$0xff]
  %v1351 = vld [vmem:[%s2 + $0x68] sm:$0xff]
  %v1352 = vld [vmem:[%s2 + $0x70] sm:$0xff]
  %v1353 = vld [vmem:[%s2 + $0x78] sm:$0xff]
  %v1354 = vld [vmem:[%s2 + $0x80] sm:$0xff]
  %v1355 = vld [vmem:[%s2 + $0x88] sm:$0xff]
  %v1356 = vld [vmem:[%s2 + $0x90] sm:$0xff]
  %v1357 = vld [vmem:[%s2 + $0x98] sm:$0xff]
  %v1358 = vld [vmem:[%s2 + $0xa0] sm:$0xff]
  %v1359 = vld [vmem:[%s2 + $0xa8] sm:$0xff]
  %v1360 = vld [vmem:[%s2 + $0xb0] sm:$0xff]
  %v1361 = vld [vmem:[%s2 + $0xb8] sm:$0xff]
  %v1362 = vld [vmem:[%s2 + $0xc0] sm:$0xff]
  %v1363 = vld [vmem:[%s2 + $0xc8] sm:$0xff]
  %v1364 = vld [vmem:[%s2 + $0xd0] sm:$0xff]
  %v1365 = vld [vmem:[%s2 + $0xd8] sm:$0xff]
  %v1366 = vld [vmem:[%s2 + $0xe0] sm:$0xff]
  %v1367 = vld [vmem:[%s2 + $0xe8] sm:$0xff]
  %v1368 = vld [vmem:[%s2 + $0xf0] sm:$0xff]
  %v1369 = vld [vmem:[%s2 + $0xf8] sm:$0xff]
  %v1370 = vld [vmem:[%s2 + $0x100] sm:$0xff]
  %v1371 = vld [vmem:[%s2 + $0x108] sm:$0xff]
  %v1372 = vld [vmem:[%s2 + $0x110] sm:$0xff]
  %v1373 = vld [vmem:[%s2 + $0x118] sm:$0xff]
  %v1374 = vld [vmem:[%s2 + $0x120] sm:$0xff]
  %v1375 = vld [vmem:[%s2 + $0x128] sm:$0xff]
  %v1376 = vld [vmem:[%s2 + $0x130] sm:$0xff]
  %v1377 = vld [vmem:[%s2 + $0x138] sm:$0xff]
  %v1378 = vld [vmem:[%s2 + $0x140] sm:$0xff]
  %v1379 = vld [vmem:[%s2 + $0x148] sm:$0xff]
  %v1380 = vld [vmem:[%s2 + $0x150] sm:$0xff]
  %v1381 = vld [vmem:[%s2 + $0x158] sm:$0xff]
  %v1382 = vld [vmem:[%s2 + $0x160] sm:$0xff]
  %v1383 = vld [vmem:[%s2 + $0x168] sm:$0xff]
  %v1384 = vld [vmem:[%s2 + $0x170] sm:$0xff]
  %v1385 = vld [vmem:[%s2 + $0x178] sm:$0xff]
  %v1386 = vld [vmem:[%s2 + $0x180] sm:$0xff]
  %v1387 = vld [vmem:[%s2 + $0x188] sm:$0xff]
  %v1388 = vld [vmem:[%s2 + $0x190] sm:$0xff]
  %v1389 = vld [vmem:[%s2 + $0x198] sm:$0xff]
  %v1390 = vld [vmem:[%s2 + $0x1a0] sm:$0xff]
  %v1391 = vld [vmem:[%s2 + $0x1a8] sm:$0xff]
  %v1392 = vld [vmem:[%s2 + $0x1b0] sm:$0xff]
  %v1393 = vld [vmem:[%s2 + $0x1b8] sm:$0xff]
  %v1394 = vld [vmem:[%s2 + $0x1c0] sm:$0xff]
  %v1395 = vld [vmem:[%s2 + $0x1c8] sm:$0xff]
  %v1396 = vld [vmem:[%s2 + $0x1d0] sm:$0xff]
  %v1397 = vld [vmem:[%s2 + $0x1d8] sm:$0xff]
  %v1398 = vld [vmem:[%s2 + $0x1e0] sm:$0xff]
  %v1399 = vld [vmem:[%s2 + $0x1e8] sm:$0xff]
  %v1400 = vld [vmem:[%s2 + $0x1f0] sm:$0xff]
  %v1401 = vld [vmem:[%s2 + $0x1f8] sm:$0xff]
  %1402 = vmatprep.subr.mxu0 %v1339
  %1403 = vmatpush1.msra.mxu0 %v1338
  %1404 = vmatprep.subr.mxu0 %v1343
  %1405 = vmatpush1.msra.mxu0 %v1342
  %1406 = vmatprep.subr.mxu0 %v1347
  %1407 = vmatpush1.msra.mxu0 %v1346
  %1408 = vmatprep.subr.mxu0 %v1351
  %1409 = vmatpush1.msra.mxu0 %v1350
  %1410 = vmatprep.subr.mxu0 %v1355
  %1411 = vmatpush1.msra.mxu0 %v1354
  %1412 = vmatprep.subr.mxu0 %v1359
  %1413 = vmatpush1.msra.mxu0 %v1358
  %1414 = vmatprep.subr.mxu0 %v1363
  %1415 = vmatpush1.msra.mxu0 %v1362
  %1416 = vmatprep.subr.mxu0 %v1367
  %1417 = vmatpush1.msra.mxu0 %v1366
  %1418 = vmatprep.subr.mxu0 %v1371
  %1419 = vmatpush1.msra.mxu0 %v1370
  %1420 = vmatprep.subr.mxu0 %v1375
  %1421 = vmatpush1.msra.mxu0 %v1374
  %1422 = vmatprep.subr.mxu0 %v1379
  %1423 = vmatpush1.msra.mxu0 %v1378
  %1424 = vmatprep.subr.mxu0 %v1383
  %1425 = vmatpush1.msra.mxu0 %v1382
  %1426 = vmatprep.subr.mxu0 %v1387
  %1427 = vmatpush1.msra.mxu0 %v1386
  %1428 = vmatprep.subr.mxu0 %v1391
  %1429 = vmatpush1.msra.mxu0 %v1390
  %1430 = vmatprep.subr.mxu0 %v1395
  %1431 = vmatpush1.msra.mxu0 %v1394
  %1432 = vmatprep.subr.mxu0 %v1399
  %1433 = vmatpush1.msra.mxu0 %v1398
  %1434 = vmatprep.subr.mxu0 0.0
  %1435 = vmatpush1.msra.mxu0 0.0
  %1436 = vmatprep.subr.mxu0 0.0
  %1437 = vmatpush1.msra.mxu0 0.0
  %1438 = vmatprep.subr.mxu0 0.0
  %1439 = vmatpush1.msra.mxu0 0.0
  %1440 = vmatprep.subr.mxu0 0.0
  %1441 = vmatpush1.msra.mxu0 0.0
  %1442 = vmatprep.subr.mxu0 0.0
  %1443 = vmatpush1.msra.mxu0 0.0
  %1444 = vmatprep.subr.mxu0 0.0
  %1445 = vmatpush1.msra.mxu0 0.0
  %1446 = vmatprep.subr.mxu0 0.0
  %1447 = vmatpush1.msra.mxu0 0.0
  %1448 = vmatprep.subr.mxu0 0.0
  %1449 = vmatpush1.msra.mxu0 0.0
  %1450 = vmatprep.subr.mxu0 0.0
  %1451 = vmatpush1.msra.mxu0 0.0
  %1452 = vmatprep.subr.mxu0 0.0
  %1453 = vmatpush1.msra.mxu0 0.0
  %1454 = vmatprep.subr.mxu0 0.0
  %1455 = vmatpush1.msra.mxu0 0.0
  %1456 = vmatprep.subr.mxu0 0.0
  %1457 = vmatpush1.msra.mxu0 0.0
  %1458 = vmatprep.subr.mxu0 0.0
  %1459 = vmatpush1.msra.mxu0 0.0
  %1460 = vmatprep.subr.mxu0 0.0
  %1461 = vmatpush1.msra.mxu0 0.0
  %1462 = vmatprep.subr.mxu0 0.0
  %1463 = vmatpush1.msra.mxu0 0.0
  %1464 = vmatprep.subr.mxu0 0.0
  %1465 = vmatpush1.msra.mxu0 0.0
  %1466 = vmatprep.mubr.f32.mxu0 0.0
  %1467 = vmatmul.mubr.f32.gmra.mrb[0].mxu0 %v1322
  %v1468 = vpop.f32.mrb[0].mxu0
  %v1469 = vadd.f32 0.0, %v1468
  %v1470 = vpop.f32.mrb[0].mxu0
  %v1471 = vadd.f32 0.0, %v1470
  %1472 = vdwg.mxu0
  %1473 = vmatprep.subr.mxu0 %v1341
  %1474 = vmatpush1.msra.mxu0 %v1340
  %1475 = vmatprep.subr.mxu0 %v1345
  %1476 = vmatpush1.msra.mxu0 %v1344
  %1477 = vmatprep.subr.mxu0 %v1349
  %1478 = vmatpush1.msra.mxu0 %v1348
  %1479 = vmatprep.subr.mxu0 %v1353
  %1480 = vmatpush1.msra.mxu0 %v1352
  %1481 = vmatprep.subr.mxu0 %v1357
  %1482 = vmatpush1.msra.mxu0 %v1356
  %1483 = vmatprep.subr.mxu0 %v1361
  %1484 = vmatpush1.msra.mxu0 %v1360
  %1485 = vmatprep.subr.mxu0 %v1365
  %1486 = vmatpush1.msra.mxu0 %v1364
  %1487 = vmatprep.subr.mxu0 %v1369
  %1488 = vmatpush1.msra.mxu0 %v1368
  %1489 = vmatprep.subr.mxu0 %v1373
  %1490 = vmatpush1.msra.mxu0 %v1372
  %1491 = vmatprep.subr.mxu0 %v1377
  %1492 = vmatpush1.msra.mxu0 %v1376
  %1493 = vmatprep.subr.mxu0 %v1381
  %1494 = vmatpush1.msra.mxu0 %v1380
  %1495 = vmatprep.subr.mxu0 %v1385
  %1496 = vmatpush1.msra.mxu0 %v1384
  %1497 = vmatprep.subr.mxu0 %v1389
  %1498 = vmatpush1.msra.mxu0 %v1388
  %1499 = vmatprep.subr.mxu0 %v1393
  %1500 = vmatpush1.msra.mxu0 %v1392
  %1501 = vmatprep.subr.mxu0 %v1397
  %1502 = vmatpush1.msra.mxu0 %v1396
  %1503 = vmatprep.subr.mxu0 %v1401
  %1504 = vmatpush1.msra.mxu0 %v1400
  %1505 = vmatprep.subr.mxu0 0.0
  %1506 = vmatpush1.msra.mxu0 0.0
  %1507 = vmatprep.subr.mxu0 0.0
  %1508 = vmatpush1.msra.mxu0 0.0
  %1509 = vmatprep.subr.mxu0 0.0
  %1510 = vmatpush1.msra.mxu0 0.0
  %1511 = vmatprep.subr.mxu0 0.0
  %1512 = vmatpush1.msra.mxu0 0.0
  %1513 = vmatprep.subr.mxu0 0.0
  %1514 = vmatpush1.msra.mxu0 0.0
  %1515 = vmatprep.subr.mxu0 0.0
  %1516 = vmatpush1.msra.mxu0 0.0
  %1517 = vmatprep.subr.mxu0 0.0
  %1518 = vmatpush1.msra.mxu0 0.0
  %1519 = vmatprep.subr.mxu0 0.0
  %1520 = vmatpush1.msra.mxu0 0.0
  %1521 = vmatprep.subr.mxu0 0.0
  %1522 = vmatpush1.msra.mxu0 0.0
  %1523 = vmatprep.subr.mxu0 0.0
  %1524 = vmatpush1.msra.mxu0 0.0
  %1525 = vmatprep.subr.mxu0 0.0
  %1526 = vmatpush1.msra.mxu0 0.0
  %1527 = vmatprep.subr.mxu0 0.0
  %1528 = vmatpush1.msra.mxu0 0.0
  %1529 = vmatprep.subr.mxu0 0.0
  %1530 = vmatpush1.msra.mxu0 0.0
  %1531 = vmatprep.subr.mxu0 0.0
  %1532 = vmatpush1.msra.mxu0 0.0
  %1533 = vmatprep.subr.mxu0 0.0
  %1534 = vmatpush1.msra.mxu0 0.0
  %1535 = vmatprep.subr.mxu0 0.0
  %1536 = vmatpush1.msra.mxu0 0.0
  %1537 = vmatprep.mubr.f32.mxu0 0.0
  %1538 = vmatmul.mubr.f32.gmra.mrb[0].mxu0 %v1322
  %v1539 = vpop.f32.mrb[0].mxu0
  %v1540 = vadd.f32 0.0, %v1539
  %v1541 = vpop.f32.mrb[0].mxu0
  %v1542 = vadd.f32 0.0, %v1541
  %1543 = vdwg.mxu0
  %v1544 = vadd.f32 %v1334, %v1469
  %v1545 = vadd.f32 %v1335, %v1471
  %v1546 = vadd.f32 %v1336, %v1540
  %v1547 = vadd.f32 %v1337, %v1542
  %v1548 = vxor.u32 %v1544, 2147483648
  %v1549 = vmul.f32 %v1548, 1.442695
  %v1550 = vpow.pop %v1549
  %v1551 = vadd.f32 %v1550, 1.0
  %v1552 = vrcp.pop %v1551
  %v1553 = vmul.f32 1.0, %v1552
  %v1554 = vxor.u32 %v1545, 2147483648
  %v1555 = vmul.f32 %v1554, 1.442695
  %v1556 = vpow.pop %v1555
  %v1557 = vadd.f32 %v1556, 1.0
  %v1558 = vrcp.pop %v1557
  %v1559 = vmul.f32 1.0, %v1558
  %v1560 = vtanh.pop %v1546
  %v1561 = vxor.u32 %v1547, 2147483648
  %v1562 = vmul.f32 %v1561, 1.442695
  %v1563 = vpow.pop %v1562
  %v1564 = vadd.f32 %v1563, 1.0
  %v1565 = vrcp.pop %v1564
  %v1566 = vmul.f32 1.0, %v1565
  %v1567 = vmul.f32 %v1559, %v1320
  %v1568 = vmul.f32 %v1553, %v1560
  %v1569 = vadd.f32 %v1567, %v1568
  %v1570 = vtanh.pop %v1569
  %v1571 = vmul.f32 %v1566, %v1570
  %s1572 = scalar_lea.vmem [#allocation4], 40
  %1573 = vst [vmem:[%s1572] sm:$0xff] %v1571
  %vm1574 = vcmp.eq.s32.totalorder %v33, 6
  %v1575 = vsel %vm1574, %v31, 0.0
  %v1576 = vsel %vm82, %v1575, 0.0
  %1577 = vadd.xlane.f32.xlu0 %v1576
  %v1578 = vpop.xlane.xlu0 %1577
  %v1579 = vmul.f32 %v1578, %v39
  %v1580 = vmul.f32 %v1578, %v43
  %v1581 = vmul.f32 %v1578, %v47
  %v1582 = vmul.f32 %v1578, %v51
  %v1583 = vadd.f32 %v61, %v1579
  %v1584 = vadd.f32 %v65, %v1580
  %v1585 = vadd.f32 %v69, %v1581
  %v1586 = vadd.f32 %v73, %v1582
  %v1587 = vld [vmem:[%s2] sm:$0xff]
  %v1588 = vld [vmem:[%s2 + $0x8] sm:$0xff]
  %v1589 = vld [vmem:[%s2 + $0x10] sm:$0xff]
  %v1590 = vld [vmem:[%s2 + $0x18] sm:$0xff]
  %v1591 = vld [vmem:[%s2 + $0x20] sm:$0xff]
  %v1592 = vld [vmem:[%s2 + $0x28] sm:$0xff]
  %v1593 = vld [vmem:[%s2 + $0x30] sm:$0xff]
  %v1594 = vld [vmem:[%s2 + $0x38] sm:$0xff]
  %v1595 = vld [vmem:[%s2 + $0x40] sm:$0xff]
  %v1596 = vld [vmem:[%s2 + $0x48] sm:$0xff]
  %v1597 = vld [vmem:[%s2 + $0x50] sm:$0xff]
  %v1598 = vld [vmem:[%s2 + $0x58] sm:$0xff]
  %v1599 = vld [vmem:[%s2 + $0x60] sm:$0xff]
  %v1600 = vld [vmem:[%s2 + $0x68] sm:$0xff]
  %v1601 = vld [vmem:[%s2 + $0x70] sm:$0xff]
  %v1602 = vld [vmem:[%s2 + $0x78] sm:$0xff]
  %v1603 = vld [vmem:[%s2 + $0x80] sm:$0xff]
  %v1604 = vld [vmem:[%s2 + $0x88] sm:$0xff]
  %v1605 = vld [vmem:[%s2 + $0x90] sm:$0xff]
  %v1606 = vld [vmem:[%s2 + $0x98] sm:$0xff]
  %v1607 = vld [vmem:[%s2 + $0xa0] sm:$0xff]
  %v1608 = vld [vmem:[%s2 + $0xa8] sm:$0xff]
  %v1609 = vld [vmem:[%s2 + $0xb0] sm:$0xff]
  %v1610 = vld [vmem:[%s2 + $0xb8] sm:$0xff]
  %v1611 = vld [vmem:[%s2 + $0xc0] sm:$0xff]
  %v1612 = vld [vmem:[%s2 + $0xc8] sm:$0xff]
  %v1613 = vld [vmem:[%s2 + $0xd0] sm:$0xff]
  %v1614 = vld [vmem:[%s2 + $0xd8] sm:$0xff]
  %v1615 = vld [vmem:[%s2 + $0xe0] sm:$0xff]
  %v1616 = vld [vmem:[%s2 + $0xe8] sm:$0xff]
  %v1617 = vld [vmem:[%s2 + $0xf0] sm:$0xff]
  %v1618 = vld [vmem:[%s2 + $0xf8] sm:$0xff]
  %v1619 = vld [vmem:[%s2 + $0x100] sm:$0xff]
  %v1620 = vld [vmem:[%s2 + $0x108] sm:$0xff]
  %v1621 = vld [vmem:[%s2 + $0x110] sm:$0xff]
  %v1622 = vld [vmem:[%s2 + $0x118] sm:$0xff]
  %v1623 = vld [vmem:[%s2 + $0x120] sm:$0xff]
  %v1624 = vld [vmem:[%s2 + $0x128] sm:$0xff]
  %v1625 = vld [vmem:[%s2 + $0x130] sm:$0xff]
  %v1626 = vld [vmem:[%s2 + $0x138] sm:$0xff]
  %v1627 = vld [vmem:[%s2 + $0x140] sm:$0xff]
  %v1628 = vld [vmem:[%s2 + $0x148] sm:$0xff]
  %v1629 = vld [vmem:[%s2 + $0x150] sm:$0xff]
  %v1630 = vld [vmem:[%s2 + $0x158] sm:$0xff]
  %v1631 = vld [vmem:[%s2 + $0x160] sm:$0xff]
  %v1632 = vld [vmem:[%s2 + $0x168] sm:$0xff]
  %v1633 = vld [vmem:[%s2 + $0x170] sm:$0xff]
  %v1634 = vld [vmem:[%s2 + $0x178] sm:$0xff]
  %v1635 = vld [vmem:[%s2 + $0x180] sm:$0xff]
  %v1636 = vld [vmem:[%s2 + $0x188] sm:$0xff]
  %v1637 = vld [vmem:[%s2 + $0x190] sm:$0xff]
  %v1638 = vld [vmem:[%s2 + $0x198] sm:$0xff]
  %v1639 = vld [vmem:[%s2 + $0x1a0] sm:$0xff]
  %v1640 = vld [vmem:[%s2 + $0x1a8] sm:$0xff]
  %v1641 = vld [vmem:[%s2 + $0x1b0] sm:$0xff]
  %v1642 = vld [vmem:[%s2 + $0x1b8] sm:$0xff]
  %v1643 = vld [vmem:[%s2 + $0x1c0] sm:$0xff]
  %v1644 = vld [vmem:[%s2 + $0x1c8] sm:$0xff]
  %v1645 = vld [vmem:[%s2 + $0x1d0] sm:$0xff]
  %v1646 = vld [vmem:[%s2 + $0x1d8] sm:$0xff]
  %v1647 = vld [vmem:[%s2 + $0x1e0] sm:$0xff]
  %v1648 = vld [vmem:[%s2 + $0x1e8] sm:$0xff]
  %v1649 = vld [vmem:[%s2 + $0x1f0] sm:$0xff]
  %v1650 = vld [vmem:[%s2 + $0x1f8] sm:$0xff]
  %1651 = vmatprep.subr.mxu0 %v1588
  %1652 = vmatpush1.msra.mxu0 %v1587
  %1653 = vmatprep.subr.mxu0 %v1592
  %1654 = vmatpush1.msra.mxu0 %v1591
  %1655 = vmatprep.subr.mxu0 %v1596
  %1656 = vmatpush1.msra.mxu0 %v1595
  %1657 = vmatprep.subr.mxu0 %v1600
  %1658 = vmatpush1.msra.mxu0 %v1599
  %1659 = vmatprep.subr.mxu0 %v1604
  %1660 = vmatpush1.msra.mxu0 %v1603
  %1661 = vmatprep.subr.mxu0 %v1608
  %1662 = vmatpush1.msra.mxu0 %v1607
  %1663 = vmatprep.subr.mxu0 %v1612
  %1664 = vmatpush1.msra.mxu0 %v1611
  %1665 = vmatprep.subr.mxu0 %v1616
  %1666 = vmatpush1.msra.mxu0 %v1615
  %1667 = vmatprep.subr.mxu0 %v1620
  %1668 = vmatpush1.msra.mxu0 %v1619
  %1669 = vmatprep.subr.mxu0 %v1624
  %1670 = vmatpush1.msra.mxu0 %v1623
  %1671 = vmatprep.subr.mxu0 %v1628
  %1672 = vmatpush1.msra.mxu0 %v1627
  %1673 = vmatprep.subr.mxu0 %v1632
  %1674 = vmatpush1.msra.mxu0 %v1631
  %1675 = vmatprep.subr.mxu0 %v1636
  %1676 = vmatpush1.msra.mxu0 %v1635
  %1677 = vmatprep.subr.mxu0 %v1640
  %1678 = vmatpush1.msra.mxu0 %v1639
  %1679 = vmatprep.subr.mxu0 %v1644
  %1680 = vmatpush1.msra.mxu0 %v1643
  %1681 = vmatprep.subr.mxu0 %v1648
  %1682 = vmatpush1.msra.mxu0 %v1647
  %1683 = vmatprep.subr.mxu0 0.0
  %1684 = vmatpush1.msra.mxu0 0.0
  %1685 = vmatprep.subr.mxu0 0.0
  %1686 = vmatpush1.msra.mxu0 0.0
  %1687 = vmatprep.subr.mxu0 0.0
  %1688 = vmatpush1.msra.mxu0 0.0
  %1689 = vmatprep.subr.mxu0 0.0
  %1690 = vmatpush1.msra.mxu0 0.0
  %1691 = vmatprep.subr.mxu0 0.0
  %1692 = vmatpush1.msra.mxu0 0.0
  %1693 = vmatprep.subr.mxu0 0.0
  %1694 = vmatpush1.msra.mxu0 0.0
  %1695 = vmatprep.subr.mxu0 0.0
  %1696 = vmatpush1.msra.mxu0 0.0
  %1697 = vmatprep.subr.mxu0 0.0
  %1698 = vmatpush1.msra.mxu0 0.0
  %1699 = vmatprep.subr.mxu0 0.0
  %1700 = vmatpush1.msra.mxu0 0.0
  %1701 = vmatprep.subr.mxu0 0.0
  %1702 = vmatpush1.msra.mxu0 0.0
  %1703 = vmatprep.subr.mxu0 0.0
  %1704 = vmatpush1.msra.mxu0 0.0
  %1705 = vmatprep.subr.mxu0 0.0
  %1706 = vmatpush1.msra.mxu0 0.0
  %1707 = vmatprep.subr.mxu0 0.0
  %1708 = vmatpush1.msra.mxu0 0.0
  %1709 = vmatprep.subr.mxu0 0.0
  %1710 = vmatpush1.msra.mxu0 0.0
  %1711 = vmatprep.subr.mxu0 0.0
  %1712 = vmatpush1.msra.mxu0 0.0
  %1713 = vmatprep.subr.mxu0 0.0
  %1714 = vmatpush1.msra.mxu0 0.0
  %1715 = vmatprep.mubr.f32.mxu0 0.0
  %1716 = vmatmul.mubr.f32.gmra.mrb[0].mxu0 %v1571
  %v1717 = vpop.f32.mrb[0].mxu0
  %v1718 = vadd.f32 0.0, %v1717
  %v1719 = vpop.f32.mrb[0].mxu0
  %v1720 = vadd.f32 0.0, %v1719
  %1721 = vdwg.mxu0
  %1722 = vmatprep.subr.mxu0 %v1590
  %1723 = vmatpush1.msra.mxu0 %v1589
  %1724 = vmatprep.subr.mxu0 %v1594
  %1725 = vmatpush1.msra.mxu0 %v1593
  %1726 = vmatprep.subr.mxu0 %v1598
  %1727 = vmatpush1.msra.mxu0 %v1597
  %1728 = vmatprep.subr.mxu0 %v1602
  %1729 = vmatpush1.msra.mxu0 %v1601
  %1730 = vmatprep.subr.mxu0 %v1606
  %1731 = vmatpush1.msra.mxu0 %v1605
  %1732 = vmatprep.subr.mxu0 %v1610
  %1733 = vmatpush1.msra.mxu0 %v1609
  %1734 = vmatprep.subr.mxu0 %v1614
  %1735 = vmatpush1.msra.mxu0 %v1613
  %1736 = vmatprep.subr.mxu0 %v1618
  %1737 = vmatpush1.msra.mxu0 %v1617
  %1738 = vmatprep.subr.mxu0 %v1622
  %1739 = vmatpush1.msra.mxu0 %v1621
  %1740 = vmatprep.subr.mxu0 %v1626
  %1741 = vmatpush1.msra.mxu0 %v1625
  %1742 = vmatprep.subr.mxu0 %v1630
  %1743 = vmatpush1.msra.mxu0 %v1629
  %1744 = vmatprep.subr.mxu0 %v1634
  %1745 = vmatpush1.msra.mxu0 %v1633
  %1746 = vmatprep.subr.mxu0 %v1638
  %1747 = vmatpush1.msra.mxu0 %v1637
  %1748 = vmatprep.subr.mxu0 %v1642
  %1749 = vmatpush1.msra.mxu0 %v1641
  %1750 = vmatprep.subr.mxu0 %v1646
  %1751 = vmatpush1.msra.mxu0 %v1645
  %1752 = vmatprep.subr.mxu0 %v1650
  %1753 = vmatpush1.msra.mxu0 %v1649
  %1754 = vmatprep.subr.mxu0 0.0
  %1755 = vmatpush1.msra.mxu0 0.0
  %1756 = vmatprep.subr.mxu0 0.0
  %1757 = vmatpush1.msra.mxu0 0.0
  %1758 = vmatprep.subr.mxu0 0.0
  %1759 = vmatpush1.msra.mxu0 0.0
  %1760 = vmatprep.subr.mxu0 0.0
  %1761 = vmatpush1.msra.mxu0 0.0
  %1762 = vmatprep.subr.mxu0 0.0
  %1763 = vmatpush1.msra.mxu0 0.0
  %1764 = vmatprep.subr.mxu0 0.0
  %1765 = vmatpush1.msra.mxu0 0.0
  %1766 = vmatprep.subr.mxu0 0.0
  %1767 = vmatpush1.msra.mxu0 0.0
  %1768 = vmatprep.subr.mxu0 0.0
  %1769 = vmatpush1.msra.mxu0 0.0
  %1770 = vmatprep.subr.mxu0 0.0
  %1771 = vmatpush1.msra.mxu0 0.0
  %1772 = vmatprep.subr.mxu0 0.0
  %1773 = vmatpush1.msra.mxu0 0.0
  %1774 = vmatprep.subr.mxu0 0.0
  %1775 = vmatpush1.msra.mxu0 0.0
  %1776 = vmatprep.subr.mxu0 0.0
  %1777 = vmatpush1.msra.mxu0 0.0
  %1778 = vmatprep.subr.mxu0 0.0
  %1779 = vmatpush1.msra.mxu0 0.0
  %1780 = vmatprep.subr.mxu0 0.0
  %1781 = vmatpush1.msra.mxu0 0.0
  %1782 = vmatprep.subr.mxu0 0.0
  %1783 = vmatpush1.msra.mxu0 0.0
  %1784 = vmatprep.subr.mxu0 0.0
  %1785 = vmatpush1.msra.mxu0 0.0
  %1786 = vmatprep.mubr.f32.mxu0 0.0
  %1787 = vmatmul.mubr.f32.gmra.mrb[0].mxu0 %v1571
  %v1788 = vpop.f32.mrb[0].mxu0
  %v1789 = vadd.f32 0.0, %v1788
  %v1790 = vpop.f32.mrb[0].mxu0
  %v1791 = vadd.f32 0.0, %v1790
  %1792 = vdwg.mxu0
  %v1793 = vadd.f32 %v1583, %v1718
  %v1794 = vadd.f32 %v1584, %v1720
  %v1795 = vadd.f32 %v1585, %v1789
  %v1796 = vadd.f32 %v1586, %v1791
  %v1797 = vxor.u32 %v1793, 2147483648
  %v1798 = vmul.f32 %v1797, 1.442695
  %v1799 = vpow.pop %v1798
  %v1800 = vadd.f32 %v1799, 1.0
  %v1801 = vrcp.pop %v1800
  %v1802 = vmul.f32 1.0, %v1801
  %v1803 = vxor.u32 %v1794, 2147483648
  %v1804 = vmul.f32 %v1803, 1.442695
  %v1805 = vpow.pop %v1804
  %v1806 = vadd.f32 %v1805, 1.0
  %v1807 = vrcp.pop %v1806
  %v1808 = vmul.f32 1.0, %v1807
  %v1809 = vtanh.pop %v1795
  %v1810 = vxor.u32 %v1796, 2147483648
  %v1811 = vmul.f32 %v1810, 1.442695
  %v1812 = vpow.pop %v1811
  %v1813 = vadd.f32 %v1812, 1.0
  %v1814 = vrcp.pop %v1813
  %v1815 = vmul.f32 1.0, %v1814
  %v1816 = vmul.f32 %v1808, %v1569
  %v1817 = vmul.f32 %v1802, %v1809
  %v1818 = vadd.f32 %v1816, %v1817
  %v1819 = vtanh.pop %v1818
  %v1820 = vmul.f32 %v1815, %v1819
  %s1821 = scalar_lea.vmem [#allocation4], 48
  %1822 = vst [vmem:[%s1821] sm:$0xff] %v1820
  %vm1823 = vcmp.eq.s32.totalorder %v33, 7
  %v1824 = vsel %vm1823, %v31, 0.0
  %v1825 = vsel %vm82, %v1824, 0.0
  %1826 = vadd.xlane.f32.xlu0 %v1825
  %v1827 = vpop.xlane.xlu0 %1826
  %v1828 = vmul.f32 %v1827, %v39
  %v1829 = vmul.f32 %v1827, %v43
  %v1830 = vmul.f32 %v1827, %v47
  %v1831 = vmul.f32 %v1827, %v51
  %v1832 = vadd.f32 %v61, %v1828
  %v1833 = vadd.f32 %v65, %v1829
  %v1834 = vadd.f32 %v69, %v1830
  %v1835 = vadd.f32 %v73, %v1831
  %v1836 = vld [vmem:[%s2] sm:$0xff]
  %v1837 = vld [vmem:[%s2 + $0x8] sm:$0xff]
  %v1838 = vld [vmem:[%s2 + $0x10] sm:$0xff]
  %v1839 = vld [vmem:[%s2 + $0x18] sm:$0xff]
  %v1840 = vld [vmem:[%s2 + $0x20] sm:$0xff]
  %v1841 = vld [vmem:[%s2 + $0x28] sm:$0xff]
  %v1842 = vld [vmem:[%s2 + $0x30] sm:$0xff]
  %v1843 = vld [vmem:[%s2 + $0x38] sm:$0xff]
  %v1844 = vld [vmem:[%s2 + $0x40] sm:$0xff]
  %v1845 = vld [vmem:[%s2 + $0x48] sm:$0xff]
  %v1846 = vld [vmem:[%s2 + $0x50] sm:$0xff]
  %v1847 = vld [vmem:[%s2 + $0x58] sm:$0xff]
  %v1848 = vld [vmem:[%s2 + $0x60] sm:$0xff]
  %v1849 = vld [vmem:[%s2 + $0x68] sm:$0xff]
  %v1850 = vld [vmem:[%s2 + $0x70] sm:$0xff]
  %v1851 = vld [vmem:[%s2 + $0x78] sm:$0xff]
  %v1852 = vld [vmem:[%s2 + $0x80] sm:$0xff]
  %v1853 = vld [vmem:[%s2 + $0x88] sm:$0xff]
  %v1854 = vld [vmem:[%s2 + $0x90] sm:$0xff]
  %v1855 = vld [vmem:[%s2 + $0x98] sm:$0xff]
  %v1856 = vld [vmem:[%s2 + $0xa0] sm:$0xff]
  %v1857 = vld [vmem:[%s2 + $0xa8] sm:$0xff]
  %v1858 = vld [vmem:[%s2 + $0xb0] sm:$0xff]
  %v1859 = vld [vmem:[%s2 + $0xb8] sm:$0xff]
  %v1860 = vld [vmem:[%s2 + $0xc0] sm:$0xff]
  %v1861 = vld [vmem:[%s2 + $0xc8] sm:$0xff]
  %v1862 = vld [vmem:[%s2 + $0xd0] sm:$0xff]
  %v1863 = vld [vmem:[%s2 + $0xd8] sm:$0xff]
  %v1864 = vld [vmem:[%s2 + $0xe0] sm:$0xff]
  %v1865 = vld [vmem:[%s2 + $0xe8] sm:$0xff]
  %v1866 = vld [vmem:[%s2 + $0xf0] sm:$0xff]
  %v1867 = vld [vmem:[%s2 + $0xf8] sm:$0xff]
  %v1868 = vld [vmem:[%s2 + $0x100] sm:$0xff]
  %v1869 = vld [vmem:[%s2 + $0x108] sm:$0xff]
  %v1870 = vld [vmem:[%s2 + $0x110] sm:$0xff]
  %v1871 = vld [vmem:[%s2 + $0x118] sm:$0xff]
  %v1872 = vld [vmem:[%s2 + $0x120] sm:$0xff]
  %v1873 = vld [vmem:[%s2 + $0x128] sm:$0xff]
  %v1874 = vld [vmem:[%s2 + $0x130] sm:$0xff]
  %v1875 = vld [vmem:[%s2 + $0x138] sm:$0xff]
  %v1876 = vld [vmem:[%s2 + $0x140] sm:$0xff]
  %v1877 = vld [vmem:[%s2 + $0x148] sm:$0xff]
  %v1878 = vld [vmem:[%s2 + $0x150] sm:$0xff]
  %v1879 = vld [vmem:[%s2 + $0x158] sm:$0xff]
  %v1880 = vld [vmem:[%s2 + $0x160] sm:$0xff]
  %v1881 = vld [vmem:[%s2 + $0x168] sm:$0xff]
  %v1882 = vld [vmem:[%s2 + $0x170] sm:$0xff]
  %v1883 = vld [vmem:[%s2 + $0x178] sm:$0xff]
  %v1884 = vld [vmem:[%s2 + $0x180] sm:$0xff]
  %v1885 = vld [vmem:[%s2 + $0x188] sm:$0xff]
  %v1886 = vld [vmem:[%s2 + $0x190] sm:$0xff]
  %v1887 = vld [vmem:[%s2 + $0x198] sm:$0xff]
  %v1888 = vld [vmem:[%s2 + $0x1a0] sm:$0xff]
  %v1889 = vld [vmem:[%s2 + $0x1a8] sm:$0xff]
  %v1890 = vld [vmem:[%s2 + $0x1b0] sm:$0xff]
  %v1891 = vld [vmem:[%s2 + $0x1b8] sm:$0xff]
  %v1892 = vld [vmem:[%s2 + $0x1c0] sm:$0xff]
  %v1893 = vld [vmem:[%s2 + $0x1c8] sm:$0xff]
  %v1894 = vld [vmem:[%s2 + $0x1d0] sm:$0xff]
  %v1895 = vld [vmem:[%s2 + $0x1d8] sm:$0xff]
  %v1896 = vld [vmem:[%s2 + $0x1e0] sm:$0xff]
  %v1897 = vld [vmem:[%s2 + $0x1e8] sm:$0xff]
  %v1898 = vld [vmem:[%s2 + $0x1f0] sm:$0xff]
  %v1899 = vld [vmem:[%s2 + $0x1f8] sm:$0xff]
  %1900 = vmatprep.subr.mxu0 %v1837
  %1901 = vmatpush1.msra.mxu0 %v1836
  %1902 = vmatprep.subr.mxu0 %v1841
  %1903 = vmatpush1.msra.mxu0 %v1840
  %1904 = vmatprep.subr.mxu0 %v1845
  %1905 = vmatpush1.msra.mxu0 %v1844
  %1906 = vmatprep.subr.mxu0 %v1849
  %1907 = vmatpush1.msra.mxu0 %v1848
  %1908 = vmatprep.subr.mxu0 %v1853
  %1909 = vmatpush1.msra.mxu0 %v1852
  %1910 = vmatprep.subr.mxu0 %v1857
  %1911 = vmatpush1.msra.mxu0 %v1856
  %1912 = vmatprep.subr.mxu0 %v1861
  %1913 = vmatpush1.msra.mxu0 %v1860
  %1914 = vmatprep.subr.mxu0 %v1865
  %1915 = vmatpush1.msra.mxu0 %v1864
  %1916 = vmatprep.subr.mxu0 %v1869
  %1917 = vmatpush1.msra.mxu0 %v1868
  %1918 = vmatprep.subr.mxu0 %v1873
  %1919 = vmatpush1.msra.mxu0 %v1872
  %1920 = vmatprep.subr.mxu0 %v1877
  %1921 = vmatpush1.msra.mxu0 %v1876
  %1922 = vmatprep.subr.mxu0 %v1881
  %1923 = vmatpush1.msra.mxu0 %v1880
  %1924 = vmatprep.subr.mxu0 %v1885
  %1925 = vmatpush1.msra.mxu0 %v1884
  %1926 = vmatprep.subr.mxu0 %v1889
  %1927 = vmatpush1.msra.mxu0 %v1888
  %1928 = vmatprep.subr.mxu0 %v1893
  %1929 = vmatpush1.msra.mxu0 %v1892
  %1930 = vmatprep.subr.mxu0 %v1897
  %1931 = vmatpush1.msra.mxu0 %v1896
  %1932 = vmatprep.subr.mxu0 0.0
  %1933 = vmatpush1.msra.mxu0 0.0
  %1934 = vmatprep.subr.mxu0 0.0
  %1935 = vmatpush1.msra.mxu0 0.0
  %1936 = vmatprep.subr.mxu0 0.0
  %1937 = vmatpush1.msra.mxu0 0.0
  %1938 = vmatprep.subr.mxu0 0.0
  %1939 = vmatpush1.msra.mxu0 0.0
  %1940 = vmatprep.subr.mxu0 0.0
  %1941 = vmatpush1.msra.mxu0 0.0
  %1942 = vmatprep.subr.mxu0 0.0
  %1943 = vmatpush1.msra.mxu0 0.0
  %1944 = vmatprep.subr.mxu0 0.0
  %1945 = vmatpush1.msra.mxu0 0.0
  %1946 = vmatprep.subr.mxu0 0.0
  %1947 = vmatpush1.msra.mxu0 0.0
  %1948 = vmatprep.subr.mxu0 0.0
  %1949 = vmatpush1.msra.mxu0 0.0
  %1950 = vmatprep.subr.mxu0 0.0
  %1951 = vmatpush1.msra.mxu0 0.0
  %1952 = vmatprep.subr.mxu0 0.0
  %1953 = vmatpush1.msra.mxu0 0.0
  %1954 = vmatprep.subr.mxu0 0.0
  %1955 = vmatpush1.msra.mxu0 0.0
  %1956 = vmatprep.subr.mxu0 0.0
  %1957 = vmatpush1.msra.mxu0 0.0
  %1958 = vmatprep.subr.mxu0 0.0
  %1959 = vmatpush1.msra.mxu0 0.0
  %1960 = vmatprep.subr.mxu0 0.0
  %1961 = vmatpush1.msra.mxu0 0.0
  %1962 = vmatprep.subr.mxu0 0.0
  %1963 = vmatpush1.msra.mxu0 0.0
  %1964 = vmatprep.mubr.f32.mxu0 0.0
  %1965 = vmatmul.mubr.f32.gmra.mrb[0].mxu0 %v1820
  %v1966 = vpop.f32.mrb[0].mxu0
  %v1967 = vadd.f32 0.0, %v1966
  %v1968 = vpop.f32.mrb[0].mxu0
  %v1969 = vadd.f32 0.0, %v1968
  %1970 = vdwg.mxu0
  %1971 = vmatprep.subr.mxu0 %v1839
  %1972 = vmatpush1.msra.mxu0 %v1838
  %1973 = vmatprep.subr.mxu0 %v1843
  %1974 = vmatpush1.msra.mxu0 %v1842
  %1975 = vmatprep.subr.mxu0 %v1847
  %1976 = vmatpush1.msra.mxu0 %v1846
  %1977 = vmatprep.subr.mxu0 %v1851
  %1978 = vmatpush1.msra.mxu0 %v1850
  %1979 = vmatprep.subr.mxu0 %v1855
  %1980 = vmatpush1.msra.mxu0 %v1854
  %1981 = vmatprep.subr.mxu0 %v1859
  %1982 = vmatpush1.msra.mxu0 %v1858
  %1983 = vmatprep.subr.mxu0 %v1863
  %1984 = vmatpush1.msra.mxu0 %v1862
  %1985 = vmatprep.subr.mxu0 %v1867
  %1986 = vmatpush1.msra.mxu0 %v1866
  %1987 = vmatprep.subr.mxu0 %v1871
  %1988 = vmatpush1.msra.mxu0 %v1870
  %1989 = vmatprep.subr.mxu0 %v1875
  %1990 = vmatpush1.msra.mxu0 %v1874
  %1991 = vmatprep.subr.mxu0 %v1879
  %1992 = vmatpush1.msra.mxu0 %v1878
  %1993 = vmatprep.subr.mxu0 %v1883
  %1994 = vmatpush1.msra.mxu0 %v1882
  %1995 = vmatprep.subr.mxu0 %v1887
  %1996 = vmatpush1.msra.mxu0 %v1886
  %1997 = vmatprep.subr.mxu0 %v1891
  %1998 = vmatpush1.msra.mxu0 %v1890
  %1999 = vmatprep.subr.mxu0 %v1895
  %2000 = vmatpush1.msra.mxu0 %v1894
  %2001 = vmatprep.subr.mxu0 %v1899
  %2002 = vmatpush1.msra.mxu0 %v1898
  %2003 = vmatprep.subr.mxu0 0.0
  %2004 = vmatpush1.msra.mxu0 0.0
  %2005 = vmatprep.subr.mxu0 0.0
  %2006 = vmatpush1.msra.mxu0 0.0
  %2007 = vmatprep.subr.mxu0 0.0
  %2008 = vmatpush1.msra.mxu0 0.0
  %2009 = vmatprep.subr.mxu0 0.0
  %2010 = vmatpush1.msra.mxu0 0.0
  %2011 = vmatprep.subr.mxu0 0.0
  %2012 = vmatpush1.msra.mxu0 0.0
  %2013 = vmatprep.subr.mxu0 0.0
  %2014 = vmatpush1.msra.mxu0 0.0
  %2015 = vmatprep.subr.mxu0 0.0
  %2016 = vmatpush1.msra.mxu0 0.0
  %2017 = vmatprep.subr.mxu0 0.0
  %2018 = vmatpush1.msra.mxu0 0.0
  %2019 = vmatprep.subr.mxu0 0.0
  %2020 = vmatpush1.msra.mxu0 0.0
  %2021 = vmatprep.subr.mxu0 0.0
  %2022 = vmatpush1.msra.mxu0 0.0
  %2023 = vmatprep.subr.mxu0 0.0
  %2024 = vmatpush1.msra.mxu0 0.0
  %2025 = vmatprep.subr.mxu0 0.0
  %2026 = vmatpush1.msra.mxu0 0.0
  %2027 = vmatprep.subr.mxu0 0.0
  %2028 = vmatpush1.msra.mxu0 0.0
  %2029 = vmatprep.subr.mxu0 0.0
  %2030 = vmatpush1.msra.mxu0 0.0
  %2031 = vmatprep.subr.mxu0 0.0
  %2032 = vmatpush1.msra.mxu0 0.0
  %2033 = vmatprep.subr.mxu0 0.0
  %2034 = vmatpush1.msra.mxu0 0.0
  %2035 = vmatprep.mubr.f32.mxu0 0.0
  %2036 = vmatmul.mubr.f32.gmra.mrb[0].mxu0 %v1820
  %v2037 = vpop.f32.mrb[0].mxu0
  %v2038 = vadd.f32 0.0, %v2037
  %v2039 = vpop.f32.mrb[0].mxu0
  %v2040 = vadd.f32 0.0, %v2039
  %2041 = vdwg.mxu0
  %v2042 = vadd.f32 %v1832, %v1967
  %v2043 = vadd.f32 %v1833, %v1969
  %v2044 = vadd.f32 %v1834, %v2038
  %v2045 = vadd.f32 %v1835, %v2040
  %v2046 = vxor.u32 %v2042, 2147483648
  %v2047 = vmul.f32 %v2046, 1.442695
  %v2048 = vpow.pop %v2047
  %v2049 = vadd.f32 %v2048, 1.0
  %v2050 = vrcp.pop %v2049
  %v2051 = vmul.f32 1.0, %v2050
  %v2052 = vxor.u32 %v2043, 2147483648
  %v2053 = vmul.f32 %v2052, 1.442695
  %v2054 = vpow.pop %v2053
  %v2055 = vadd.f32 %v2054, 1.0
  %v2056 = vrcp.pop %v2055
  %v2057 = vmul.f32 1.0, %v2056
  %v2058 = vtanh.pop %v2044
  %v2059 = vxor.u32 %v2045, 2147483648
  %v2060 = vmul.f32 %v2059, 1.442695
  %v2061 = vpow.pop %v2060
  %v2062 = vadd.f32 %v2061, 1.0
  %v2063 = vrcp.pop %v2062
  %v2064 = vmul.f32 1.0, %v2063
  %v2065 = vmul.f32 %v2057, %v1818
  %v2066 = vmul.f32 %v2051, %v2058
  %v2067 = vadd.f32 %v2065, %v2066
  %v2068 = vtanh.pop %v2067
  %v2069 = vmul.f32 %v2064, %v2068
  %s2070 = scalar_lea.vmem [#allocation4], 56
  %2071 = vst [vmem:[%s2070] sm:$0xff] %v2069
  %2072 = vst [vmem:[#allocation2] sm:$0xff] %v2069
  %2073 = vst [vmem:[#allocation3] sm:$0xff] %v2067
  %v2074 = vld [vmem:[%s4] sm:$0xff]
  %v2075 = vld [vmem:[#allocation4] sm:$0xff]
  %v2076 = vld [vmem:[#allocation4 + $0x8] sm:$0xff]
  %v2077 = vld [vmem:[#allocation4 + $0x10] sm:$0xff]
  %v2078 = vld [vmem:[#allocation4 + $0x18] sm:$0xff]
  %v2079 = vld [vmem:[#allocation4 + $0x20] sm:$0xff]
  %v2080 = vld [vmem:[#allocation4 + $0x28] sm:$0xff]
  %v2081 = vld [vmem:[#allocation4 + $0x30] sm:$0xff]
  %v2082 = vld [vmem:[#allocation4 + $0x38] sm:$0xff]
  %2083 = vmatprep.subr.mxu0 0.0
  %2084 = vmatpush1.xpose.msra.mxu0 %v2075
  %2085 = vmatprep.subr.mxu0 0.0
  %2086 = vmatpush1.xpose.msra.mxu0 %v2076
  %2087 = vmatprep.subr.mxu0 0.0
  %2088 = vmatpush1.xpose.msra.mxu0 %v2077
  %2089 = vmatprep.subr.mxu0 0.0
  %2090 = vmatpush1.xpose.msra.mxu0 %v2078
  %2091 = vmatprep.subr.mxu0 0.0
  %2092 = vmatpush1.xpose.msra.mxu0 %v2079
  %2093 = vmatprep.subr.mxu0 0.0
  %2094 = vmatpush1.xpose.msra.mxu0 %v2080
  %2095 = vmatprep.subr.mxu0 0.0
  %2096 = vmatpush1.xpose.msra.mxu0 %v2081
  %2097 = vmatprep.subr.mxu0 0.0
  %2098 = vmatpush1.xpose.msra.mxu0 %v2082
  %2099 = vmatprep.subr.mxu0 0.0
  %2100 = vmatpush1.xpose.msra.mxu0 0.0
  %2101 = vmatprep.subr.mxu0 0.0
  %2102 = vmatpush1.xpose.msra.mxu0 0.0
  %2103 = vmatprep.subr.mxu0 0.0
  %2104 = vmatpush1.xpose.msra.mxu0 0.0
  %2105 = vmatprep.subr.mxu0 0.0
  %2106 = vmatpush1.xpose.msra.mxu0 0.0
  %2107 = vmatprep.subr.mxu0 0.0
  %2108 = vmatpush1.xpose.msra.mxu0 0.0
  %2109 = vmatprep.subr.mxu0 0.0
  %2110 = vmatpush1.xpose.msra.mxu0 0.0
  %2111 = vmatprep.subr.mxu0 0.0
  %2112 = vmatpush1.xpose.msra.mxu0 0.0
  %2113 = vmatprep.subr.mxu0 0.0
  %2114 = vmatpush1.xpose.msra.mxu0 0.0
  %2115 = vmatprep.subr.mxu0 0.0
  %2116 = vmatpush1.xpose.msra.mxu0 0.0
  %2117 = vmatprep.subr.mxu0 0.0
  %2118 = vmatpush1.xpose.msra.mxu0 0.0
  %2119 = vmatprep.subr.mxu0 0.0
  %2120 = vmatpush1.xpose.msra.mxu0 0.0
  %2121 = vmatprep.subr.mxu0 0.0
  %2122 = vmatpush1.xpose.msra.mxu0 0.0
  %2123 = vmatprep.subr.mxu0 0.0
  %2124 = vmatpush1.xpose.msra.mxu0 0.0
  %2125 = vmatprep.subr.mxu0 0.0
  %2126 = vmatpush1.xpose.msra.mxu0 0.0
  %2127 = vmatprep.subr.mxu0 0.0
  %2128 = vmatpush1.xpose.msra.mxu0 0.0
  %2129 = vmatprep.subr.mxu0 0.0
  %2130 = vmatpush1.xpose.msra.mxu0 0.0
  %2131 = vmatprep.subr.mxu0 0.0
  %2132 = vmatpush1.xpose.msra.mxu0 0.0
  %2133 = vmatprep.subr.mxu0 0.0
  %2134 = vmatpush1.xpose.msra.mxu0 0.0
  %2135 = vmatprep.subr.mxu0 0.0
  %2136 = vmatpush1.xpose.msra.mxu0 0.0
  %2137 = vmatprep.subr.mxu0 0.0
  %2138 = vmatpush1.xpose.msra.mxu0 0.0
  %2139 = vmatprep.subr.mxu0 0.0
  %2140 = vmatpush1.xpose.msra.mxu0 0.0
  %2141 = vmatprep.subr.mxu0 0.0
  %2142 = vmatpush1.xpose.msra.mxu0 0.0
  %2143 = vmatprep.subr.mxu0 0.0
  %2144 = vmatpush1.xpose.msra.mxu0 0.0
  %2145 = vmatprep.subr.mxu0 0.0
  %2146 = vmatpush1.xpose.msra.mxu0 0.0
  %2147 = vmatprep.mubr.f32.mxu0 0.0
  %2148 = vmatmul.mubr.f32.gmra.mrb[0].mxu0 %v2074
  %v2149 = vpop.f32.mrb[0].mxu0
  %v2150 = vadd.f32 0.0, %v2149
  %v2151 = vpop.f32.mrb[0].mxu0
  %2152 = vdwg.mxu0
  %v2153 = vld [vmem:[#allocation5] sm:$0x1]
  %2155 = vset.pattern.permute.xlu0 0
  %2156 = vperm.xlu0 %2155, %v2153
  %v2157 = vpop.permute.xlu0 %2156
  %v2159 = vlaneseq
  %v2160 = vshrl.u32 %v2159, 7
  %v2161 = vsub.s32 0, %v2160
  %v2162 = vrot.slane %v2157, %v2161
  %v2163 = vadd.f32 %v2150, %v2162
  %vm2164 = vcmask 516096
  %2165 = vst.msk [vmem:[%s6] sm:$0x1] %vm2164, %v2163
  // Predicated region
  $region30: #{bit_lstm_forward.1} parent=0 // pred_check
    _
  $region31: #{bit_lstm_forward.1} parent=0 // pred_check_branch
    %2167 = sbr.rel (0) target = $region33
  $region32: #{bit_lstm_forward.1} parent=0 // pred_region
    _
  $region33: #{bit_lstm_forward.1} parent=0 // pred_fallthru
    _
  // Predicated region
  $region34: #{bit_lstm_forward.1} parent=0 // pred_check
    _
  $region35: #{bit_lstm_forward.1} parent=0 // pred_check_branch
    %2169 = sbr.rel (0) target = $region37
  $region36: #{bit_lstm_forward.1} parent=0 // pred_region
    _
  $region37: #{bit_lstm_forward.1} parent=0 // pred_fallthru
    _

</llo_original>
